<compile_context>
chip_gen: v7x
topology: tpu7x:2x2x1
jax: 0.10.0
libtpu: 0.0.40
codegen_flags: <defaults>
</compile_context>

<pallas_src>
import functools

import jax
import jax.numpy as jnp
from jax.experimental import pallas as pl
from jax.experimental.pallas import tpu as pltpu

INPUT_DIM, HIDDEN_DIM, SQUEEZE_DIM, OUTPUT_DIM = 16, 32, 32, 8
NUM_BLOCKS = 2


def make_kernel(input_dim, hidden_dim, output_dim, num_blocks):
    """Kernel over one row-tile. w_ref: (L, D, D) packed weights, b_ref: (L, D)
    packed biases, with L = 2 + 2*num_blocks and D = hidden_dim. Layer l's
    true weight sits in w_ref[l, :fan_in_l, :fan_out_l] (zero padded)."""

    def kernel(x_ref, w_ref, b_ref, o_ref):
        f32 = jnp.float32
        x = x_ref[...]                                   # (TM, input_dim)

        # linear_in (no activation after it)
        w_in = w_ref[0][:input_dim, :]                   # (input_dim, hidden)
        h = jnp.dot(x, w_in, preferred_element_type=f32) + b_ref[0:1, :]

        # residual blocks: y = relu(relu(h@W1+b1)@W2+b2); h = h + y
        for blk in range(num_blocks):
            l1 = 1 + 2 * blk
            l2 = l1 + 1
            y = jnp.dot(h, w_ref[l1], preferred_element_type=f32) + b_ref[l1:l1 + 1, :]
            y = jnp.maximum(y, 0.0)                      # hidden ReLU
            y = jnp.dot(y, w_ref[l2], preferred_element_type=f32) + b_ref[l2:l2 + 1, :]
            y = jnp.maximum(y, 0.0)                      # block output ReLU
            h = h + y                                    # residual skip

        # linear_out (output_activation=None)
        l_out = 1 + 2 * num_blocks
        w_out = w_ref[l_out][:, :output_dim]             # (hidden, output_dim)
        b_out = b_ref[l_out:l_out + 1, :output_dim]      # (1, output_dim)
        o_ref[...] = (jnp.dot(h, w_out, preferred_element_type=f32) + b_out).astype(o_ref.dtype)

    return kernel


def pack_params(params, *, input_dim, hidden_dim, output_dim, num_blocks):
    """Pack 13 small arrays into one (L, D, D) weight stack + one (L, D) bias
    stack (zero padded), L = 2 + 2*num_blocks, D = hidden_dim."""
    assert SQUEEZE_DIM == hidden_dim, "packing assumes squeeze_dim == hidden_dim"
    n_layers = 2 + 2 * num_blocks
    d = hidden_dim
    w_all = jnp.zeros((n_layers, d, d), jnp.float32)
    b_all = jnp.zeros((n_layers, d), jnp.float32)

    def put(w_all, b_all, idx, w, b):
        w_all = w_all.at[idx, : w.shape[0], : w.shape[1]].set(w)
        b_all = b_all.at[idx, : b.shape[-1]].set(b.reshape(-1))
        return w_all, b_all

    w_all, b_all = put(w_all, b_all, 0, params["w_in"], params["b_in"])
    for blk in range(num_blocks):
        w_all, b_all = put(w_all, b_all, 1 + 2 * blk, params[f"w1_{blk}"], params[f"b1_{blk}"])
        w_all, b_all = put(w_all, b_all, 2 + 2 * blk, params[f"w2_{blk}"], params[f"b2_{blk}"])
    w_all, b_all = put(w_all, b_all, 1 + 2 * num_blocks, params["w_out"], params["b_out"])
    return w_all, b_all


@functools.partial(jax.jit, static_argnames=("input_dim", "hidden_dim", "output_dim",
                                             "num_blocks", "block_rows"))
def feedforward_pallas(x_flat, w_all, b_all, *, input_dim, hidden_dim, output_dim,
                       num_blocks, block_rows=512):
    """x_flat: (N, input_dim) float32. Returns (N, output_dim) float32."""
    n = x_flat.shape[0]

    # Row tile: multiple of 8 sublanes, capped at block_rows, not larger than
    # the (padded) row count.
    tm = max(8, min(block_rows, ((n + 7) // 8) * 8))
    n_pad = pl.cdiv(n, tm) * tm
    if n_pad != n:
        x_flat = jnp.pad(x_flat, ((0, n_pad - n), (0, 0)))
    grid = (n_pad // tm,)

    kernel = make_kernel(input_dim, hidden_dim, output_dim, num_blocks)

    flops_per_row = 2 * (input_dim * hidden_dim
                         + num_blocks * 2 * hidden_dim * hidden_dim
                         + hidden_dim * output_dim)
    cost = pl.CostEstimate(
        flops=flops_per_row * n_pad,
        bytes_accessed=n_pad * (input_dim + output_dim) * 4 + w_all.size * 4 + b_all.size * 4,
        transcendentals=0,
    )

    out = pl.pallas_call(
        kernel,
        out_shape=jax.ShapeDtypeStruct((n_pad, output_dim), jnp.float32),
        grid_spec=pltpu.PrefetchScalarGridSpec(
            num_scalar_prefetch=0,
            grid=grid,
            in_specs=[
                # activations: tiled over rows, double-buffered by Pallas
                pl.BlockSpec((tm, input_dim), lambda i: (i, 0)),
                # packed params: same block every step -> VMEM-resident
                pl.BlockSpec(w_all.shape, lambda i: (0, 0, 0)),
                pl.BlockSpec(b_all.shape, lambda i: (0, 0)),
            ],
            out_specs=pl.BlockSpec((tm, output_dim), lambda i: (i, 0)),
        ),
        compiler_params=pltpu.CompilerParams(
            # rows are independent -> shard across v7x's 2 TensorCores
            dimension_semantics=("parallel",),
        ),
        cost_estimate=cost,
    )(x_flat, w_all, b_all)
    return out[:n]


def feedforward_reference(x_flat, params, num_blocks=NUM_BLOCKS):
    """Pure-JAX reference matching the PyTorch forward exactly."""
    h = x_flat @ params["w_in"] + params["b_in"]
    for b in range(num_blocks):
        y = jnp.maximum(h @ params[f"w1_{b}"] + params[f"b1_{b}"], 0.0)
        y = jnp.maximum(y @ params[f"w2_{b}"] + params[f"b2_{b}"], 0.0)
        h = h + y
    return h @ params["w_out"] + params["b_out"]


def init_params(key, input_dim, hidden_dim, squeeze_dim, output_dim):
    """Deterministic synthetic init (uniform, fan-in scaled). Biases kept as
    (1, dim) rows."""
    def linear(k, fan_in, fan_out):
        kw, kb = jax.random.split(k)
        lim = 1.0 / jnp.sqrt(jnp.float32(fan_in))
        w = jax.random.uniform(kw, (fan_in, fan_out), jnp.float32, -lim, lim)
        b = jax.random.uniform(kb, (1, fan_out), jnp.float32, -lim, lim)
        return w, b

    keys = jax.random.split(key, 6)
    p = {}
    p["w_in"], p["b_in"] = linear(keys[0], input_dim, hidden_dim)
    p["w1_0"], p["b1_0"] = linear(keys[1], hidden_dim, squeeze_dim)
    p["w2_0"], p["b2_0"] = linear(keys[2], squeeze_dim, hidden_dim)
    p["w1_1"], p["b1_1"] = linear(keys[3], hidden_dim, squeeze_dim)
    p["w2_1"], p["b2_1"] = linear(keys[4], squeeze_dim, hidden_dim)
    p["w_out"], p["b_out"] = linear(keys[5], hidden_dim, output_dim)
    return p


if __name__ == "__main__":
    BATCH, SEQ = 2, 200  # N = 400 rows -> exercises grid (4 tiles of 128) + tail padding

    key = jax.random.PRNGKey(0)
    k_x, k_p = jax.random.split(key)

    x = jax.random.normal(k_x, (BATCH, SEQ, INPUT_DIM), jnp.float32)
    params = init_params(k_p, INPUT_DIM, HIDDEN_DIM, SQUEEZE_DIM, OUTPUT_DIM)
    w_all, b_all = pack_params(params, input_dim=INPUT_DIM, hidden_dim=HIDDEN_DIM,
                               output_dim=OUTPUT_DIM, num_blocks=NUM_BLOCKS)

    # Glue: torch.nn.Linear acts on trailing dim only -> flatten leading dims.
    x_flat = x.reshape(-1, INPUT_DIM)

    out_flat = feedforward_pallas(
        x_flat, w_all, b_all,
        input_dim=INPUT_DIM, hidden_dim=HIDDEN_DIM, output_dim=OUTPUT_DIM,
        num_blocks=NUM_BLOCKS, block_rows=128,
    )
    out = out_flat.reshape(BATCH, SEQ, OUTPUT_DIM)
    jax.block_until_ready(out)

    ref = feedforward_reference(x_flat, params).reshape(BATCH, SEQ, OUTPUT_DIM)
    assert out.shape == (BATCH, SEQ, OUTPUT_DIM)
    assert jnp.allclose(out, ref, atol=1e-5, rtol=1e-5), "mismatch vs JAX reference"

    print("KERNEL_OK")
</pallas_src>

<mosaic_0001>
module attributes {stable_mosaic.version = 11 : i64} {
  func.func @kernel(%arg0: i32, %arg1: memref<128x16xf32, #tpu.memory_space<vmem>>, %arg2: memref<6x32x32xf32, #tpu.memory_space<vmem>>, %arg3: memref<6x32xf32, #tpu.memory_space<vmem>>, %arg4: memref<128x8xf32, #tpu.memory_space<vmem>>) attributes {dimension_semantics = [#tpu.dimension_semantics<parallel>], iteration_bounds = array<i64: 4>, scalar_prefetch = 0 : i64, scratch_operands = 0 : i64, tpu.core_type = #tpu.core_type<tc>, window_params = [{transform_indices = @transform_0, window_bounds = array<i64: 128, 16>}, {pipeline_mode = #tpu.pipeline_mode<synchronous>, transform_indices = @transform_1, window_bounds = array<i64: 6, 32, 32>}, {pipeline_mode = #tpu.pipeline_mode<synchronous>, transform_indices = @transform_2, window_bounds = array<i64: 6, 32>}, {transform_indices = @transform_3, window_bounds = array<i64: 128, 8>}]} {
    %c0 = arith.constant 0 : index
    %c0_0 = arith.constant 0 : index
    %0 = vector.load %arg1[%c0, %c0_0] : memref<128x16xf32, #tpu.memory_space<vmem>>, vector<128x16xf32>
    %c0_1 = arith.constant 0 : index
    %c0_2 = arith.constant 0 : index
    %c0_3 = arith.constant 0 : index
    %1 = vector.load %arg2[%c0_1, %c0_2, %c0_3] : memref<6x32x32xf32, #tpu.memory_space<vmem>>, vector<1x32x32xf32>
    %2 = vector.shape_cast %1 : vector<1x32x32xf32> to vector<32x32xf32>
    %3 = vector.extract_strided_slice %2 {offsets = [0, 0], sizes = [16, 32], strides = [1, 1]} : vector<32x32xf32> to vector<16x32xf32>
    %cst = arith.constant dense<0.000000e+00> : vector<128x32xf32>
    %4 = tpu.matmul %0, %3, %cst {dimension_numbers = #tpu.dot_dimension_numbers<[1], [0], [0], [1], [0, 0, 1, 1], [], []>} : vector<128x16xf32>, vector<16x32xf32>, vector<128x32xf32> -> vector<128x32xf32>
    %c0_4 = arith.constant 0 : index
    %c0_5 = arith.constant 0 : index
    %5 = vector.load %arg3[%c0_4, %c0_5] : memref<6x32xf32, #tpu.memory_space<vmem>>, vector<1x32xf32>
    %6 = vector.broadcast %5 : vector<1x32xf32> to vector<128x32xf32>
    %7 = arith.addf %4, %6 : vector<128x32xf32>
    %c1 = arith.constant 1 : index
    %c0_6 = arith.constant 0 : index
    %c0_7 = arith.constant 0 : index
    %8 = vector.load %arg2[%c1, %c0_6, %c0_7] : memref<6x32x32xf32, #tpu.memory_space<vmem>>, vector<1x32x32xf32>
    %9 = vector.shape_cast %8 : vector<1x32x32xf32> to vector<32x32xf32>
    %cst_8 = arith.constant dense<0.000000e+00> : vector<128x32xf32>
    %10 = tpu.matmul %7, %9, %cst_8 {dimension_numbers = #tpu.dot_dimension_numbers<[1], [0], [0], [1], [0, 0, 1, 1], [], []>} : vector<128x32xf32>, vector<32x32xf32>, vector<128x32xf32> -> vector<128x32xf32>
    %c1_9 = arith.constant 1 : index
    %c0_10 = arith.constant 0 : index
    %11 = vector.load %arg3[%c1_9, %c0_10] : memref<6x32xf32, #tpu.memory_space<vmem>>, vector<1x32xf32>
    %12 = vector.broadcast %11 : vector<1x32xf32> to vector<128x32xf32>
    %13 = arith.addf %10, %12 : vector<128x32xf32>
    %cst_11 = arith.constant 0.000000e+00 : f32
    %14 = vector.broadcast %cst_11 : f32 to vector<128x32xf32>
    %15 = arith.maximumf %13, %14 : vector<128x32xf32>
    %c2 = arith.constant 2 : index
    %c0_12 = arith.constant 0 : index
    %c0_13 = arith.constant 0 : index
    %16 = vector.load %arg2[%c2, %c0_12, %c0_13] : memref<6x32x32xf32, #tpu.memory_space<vmem>>, vector<1x32x32xf32>
    %17 = vector.shape_cast %16 : vector<1x32x32xf32> to vector<32x32xf32>
    %cst_14 = arith.constant dense<0.000000e+00> : vector<128x32xf32>
    %18 = tpu.matmul %15, %17, %cst_14 {dimension_numbers = #tpu.dot_dimension_numbers<[1], [0], [0], [1], [0, 0, 1, 1], [], []>} : vector<128x32xf32>, vector<32x32xf32>, vector<128x32xf32> -> vector<128x32xf32>
    %c2_15 = arith.constant 2 : index
    %c0_16 = arith.constant 0 : index
    %19 = vector.load %arg3[%c2_15, %c0_16] : memref<6x32xf32, #tpu.memory_space<vmem>>, vector<1x32xf32>
    %20 = vector.broadcast %19 : vector<1x32xf32> to vector<128x32xf32>
    %21 = arith.addf %18, %20 : vector<128x32xf32>
    %cst_17 = arith.constant 0.000000e+00 : f32
    %22 = vector.broadcast %cst_17 : f32 to vector<128x32xf32>
    %23 = arith.maximumf %21, %22 : vector<128x32xf32>
    %24 = arith.addf %7, %23 : vector<128x32xf32>
    %c3 = arith.constant 3 : index
    %c0_18 = arith.constant 0 : index
    %c0_19 = arith.constant 0 : index
    %25 = vector.load %arg2[%c3, %c0_18, %c0_19] : memref<6x32x32xf32, #tpu.memory_space<vmem>>, vector<1x32x32xf32>
    %26 = vector.shape_cast %25 : vector<1x32x32xf32> to vector<32x32xf32>
    %cst_20 = arith.constant dense<0.000000e+00> : vector<128x32xf32>
    %27 = tpu.matmul %24, %26, %cst_20 {dimension_numbers = #tpu.dot_dimension_numbers<[1], [0], [0], [1], [0, 0, 1, 1], [], []>} : vector<128x32xf32>, vector<32x32xf32>, vector<128x32xf32> -> vector<128x32xf32>
    %c3_21 = arith.constant 3 : index
    %c0_22 = arith.constant 0 : index
    %28 = vector.load %arg3[%c3_21, %c0_22] : memref<6x32xf32, #tpu.memory_space<vmem>>, vector<1x32xf32>
    %29 = vector.broadcast %28 : vector<1x32xf32> to vector<128x32xf32>
    %30 = arith.addf %27, %29 : vector<128x32xf32>
    %cst_23 = arith.constant 0.000000e+00 : f32
    %31 = vector.broadcast %cst_23 : f32 to vector<128x32xf32>
    %32 = arith.maximumf %30, %31 : vector<128x32xf32>
    %c4 = arith.constant 4 : index
    %c0_24 = arith.constant 0 : index
    %c0_25 = arith.constant 0 : index
    %33 = vector.load %arg2[%c4, %c0_24, %c0_25] : memref<6x32x32xf32, #tpu.memory_space<vmem>>, vector<1x32x32xf32>
    %34 = vector.shape_cast %33 : vector<1x32x32xf32> to vector<32x32xf32>
    %cst_26 = arith.constant dense<0.000000e+00> : vector<128x32xf32>
    %35 = tpu.matmul %32, %34, %cst_26 {dimension_numbers = #tpu.dot_dimension_numbers<[1], [0], [0], [1], [0, 0, 1, 1], [], []>} : vector<128x32xf32>, vector<32x32xf32>, vector<128x32xf32> -> vector<128x32xf32>
    %c4_27 = arith.constant 4 : index
    %c0_28 = arith.constant 0 : index
    %36 = vector.load %arg3[%c4_27, %c0_28] : memref<6x32xf32, #tpu.memory_space<vmem>>, vector<1x32xf32>
    %37 = vector.broadcast %36 : vector<1x32xf32> to vector<128x32xf32>
    %38 = arith.addf %35, %37 : vector<128x32xf32>
    %cst_29 = arith.constant 0.000000e+00 : f32
    %39 = vector.broadcast %cst_29 : f32 to vector<128x32xf32>
    %40 = arith.maximumf %38, %39 : vector<128x32xf32>
    %41 = arith.addf %24, %40 : vector<128x32xf32>
    %c5 = arith.constant 5 : index
    %c0_30 = arith.constant 0 : index
    %c0_31 = arith.constant 0 : index
    %42 = vector.load %arg2[%c5, %c0_30, %c0_31] : memref<6x32x32xf32, #tpu.memory_space<vmem>>, vector<1x32x32xf32>
    %43 = vector.shape_cast %42 : vector<1x32x32xf32> to vector<32x32xf32>
    %44 = vector.extract_strided_slice %43 {offsets = [0, 0], sizes = [32, 8], strides = [1, 1]} : vector<32x32xf32> to vector<32x8xf32>
    %c5_32 = arith.constant 5 : index
    %c0_33 = arith.constant 0 : index
    %45 = vector.load %arg3[%c5_32, %c0_33] : memref<6x32xf32, #tpu.memory_space<vmem>>, vector<1x8xf32>
    %cst_34 = arith.constant dense<0.000000e+00> : vector<128x8xf32>
    %46 = tpu.matmul %41, %44, %cst_34 {dimension_numbers = #tpu.dot_dimension_numbers<[1], [0], [0], [1], [0, 0, 1, 1], [], []>} : vector<128x32xf32>, vector<32x8xf32>, vector<128x8xf32> -> vector<128x8xf32>
    %47 = vector.broadcast %45 : vector<1x8xf32> to vector<128x8xf32>
    %48 = arith.addf %46, %47 : vector<128x8xf32>
    %c0_35 = arith.constant 0 : index
    %c0_36 = arith.constant 0 : index
    %49 = vector.load %arg4[%c0_35, %c0_36] : memref<128x8xf32, #tpu.memory_space<vmem>>, vector<128x8xf32>
    tpu.vector_store %arg4[%c0_35, %c0_36], %48 {strides = array<i32>} : memref<128x8xf32, #tpu.memory_space<vmem>>, vector<128x8xf32>,
    return
  }
  func.func @transform_0(%arg0: i32) -> (i32, i32) {
    %c0_i32 = arith.constant 0 : i32
    %c0_i32_0 = arith.constant 0 : i32
    return %arg0, %c0_i32 : i32, i32
  }
  func.func @transform_1(%arg0: i32) -> (i32, i32, i32) {
    %c0_i32 = arith.constant 0 : i32
    %c0_i32_0 = arith.constant 0 : i32
    %c0_i32_1 = arith.constant 0 : i32
    %c0_i32_2 = arith.constant 0 : i32
    return %c0_i32, %c0_i32_0, %c0_i32_1 : i32, i32, i32
  }
  func.func @transform_2(%arg0: i32) -> (i32, i32) {
    %c0_i32 = arith.constant 0 : i32
    %c0_i32_0 = arith.constant 0 : i32
    %c0_i32_1 = arith.constant 0 : i32
    return %c0_i32, %c0_i32_0 : i32, i32
  }
  func.func @transform_3(%arg0: i32) -> (i32, i32) {
    %c0_i32 = arith.constant 0 : i32
    %c0_i32_0 = arith.constant 0 : i32
    return %arg0, %c0_i32 : i32, i32
  }
}

</mosaic_0001>

<llo_original>
// kernel: feedforward_pallas.1
$region0: #{feedforward_pallas.1}
  #allocation0 [shape = 'u32[]', space=smem, size = 0x4, offset = 0x4, fixed_abs, tag = 'smem constant byte address 0x4 - core index']
  #allocation1 [shape = 'u32[144,128]{1,0:T(1,128)}', space=vmem, size = 0x12000, scoped, tag = 'internal scratch']
  %s0 = inlined_call_operand.vmem [shape: f32[512,16], index: 0, kind: input, shape index: {}]
  %s1 = inlined_call_operand.vmem [shape: f32[6,32,32], index: 1, kind: input, shape index: {}]
  %s2 = inlined_call_operand.vmem [shape: f32[6,32], index: 2, kind: input, shape index: {}]
  %s3 = inlined_call_operand.vmem [shape: f32[512,8], index: 3, kind: output, shape index: {}]
  %s4 = sld [smem:[#allocation0]]
  $region45: #{feedforward_pallas.1} parent=0
    _
  %s6 = ssub.s32 1, %s4
  %s7 = scalar_select 0, %s6, %s4
  loop: start=0, step=1, limit=6
  $region2: #{feedforward_pallas.1} parent=0 // loop_pre_header
    _
  $region3: #{feedforward_pallas.1} parent=0 // loop_header
    %s9 = sphi 0, %s13
    %p10 = scmp.ge.s32.totalorder %s9, 6
    %s19 = sphi 0, %s21
    %s22 = sphi 0, %s19
    %s23 = sphi 0, %s22
    %s39 = sphi 0, %s23
    %s43 = sphi 0, %s43
    %s45 = sphi 0, %s43
    %s46 = sphi 0, %s45
    %s60 = sphi 0, %s46
    %s64 = sphi 0, %s64
    %s66 = sphi 0, %s64
    %s67 = sphi 0, %s66
    %s81 = sphi 0, %s67
    %s87 = sphi 0, %s89
    %s90 = sphi 0, %s87
    %s91 = sphi 0, %s90
    %s107 = sphi 0, %s91
  $region4: #{feedforward_pallas.1} parent=0 // loop_header_branch
    %12 = sbr.rel (%p10) target = $region8
  $region5: #{feedforward_pallas.1} parent=0 // loop_body
    %s14 = ssub.s32 %s9, 1
    %s15 = ssub.s32 %s9, 2
    %s16 = sadd.s32 %s9, 1
    %s17 = ssub.s32 %s9, %s16
    %p18 = scmp.eq.s32.totalorder %s17, 0
    %s20 = sadd.s32 %s19, 1
    %s21 = scalar_select %p18, %s19, %s20
    %p24 = pneg %p18
    %p25 = scmp.eq.s32.totalorder %s9, 3
    %p26 = por %p24, %p25
    %p27 = scmp.ne.s32.totalorder %s19, %s22
    %p28 = scmp.eq.s32.totalorder %s9, 0
    %p29 = por %p27, %p28
    %p30 = scmp.ne.s32.totalorder %s19, %s22
    %p31 = scmp.eq.s32.totalorder %s14, 3
    %p32 = por %p30, %p31
    %p33 = scmp.ne.s32.totalorder %s22, %s23
    %p34 = scmp.eq.s32.totalorder %s14, 0
    %p35 = por %p33, %p34
    %p36 = scmp.ne.s32.totalorder %s22, %s23
    %p37 = scmp.eq.s32.totalorder %s15, 3
    %p38 = por %p36, %p37
    %p40 = scmp.ne.s32.totalorder %s23, %s39
    %p41 = scmp.eq.s32.totalorder %s15, 0
    %p42 = por %p40, %p41
    %s44 = sadd.s32 %s43, 1
    %p47 = scmp.eq.s32.totalorder %s9, 3
    %p48 = scmp.ne.s32.totalorder %s43, %s45
    %p49 = scmp.eq.s32.totalorder %s9, 0
    %p50 = por %p48, %p49
    %p51 = scmp.ne.s32.totalorder %s43, %s45
    %p52 = scmp.eq.s32.totalorder %s14, 3
    %p53 = por %p51, %p52
    %p54 = scmp.ne.s32.totalorder %s45, %s46
    %p55 = scmp.eq.s32.totalorder %s14, 0
    %p56 = por %p54, %p55
    %p57 = scmp.ne.s32.totalorder %s45, %s46
    %p58 = scmp.eq.s32.totalorder %s15, 3
    %p59 = por %p57, %p58
    %p61 = scmp.ne.s32.totalorder %s46, %s60
    %p62 = scmp.eq.s32.totalorder %s15, 0
    %p63 = por %p61, %p62
    %s65 = sadd.s32 %s64, 1
    %p68 = scmp.eq.s32.totalorder %s9, 3
    %p69 = scmp.ne.s32.totalorder %s64, %s66
    %p70 = scmp.eq.s32.totalorder %s9, 0
    %p71 = por %p69, %p70
    %p72 = scmp.ne.s32.totalorder %s64, %s66
    %p73 = scmp.eq.s32.totalorder %s14, 3
    %p74 = por %p72, %p73
    %p75 = scmp.ne.s32.totalorder %s66, %s67
    %p76 = scmp.eq.s32.totalorder %s14, 0
    %p77 = por %p75, %p76
    %p78 = scmp.ne.s32.totalorder %s66, %s67
    %p79 = scmp.eq.s32.totalorder %s15, 3
    %p80 = por %p78, %p79
    %p82 = scmp.ne.s32.totalorder %s67, %s81
    %p83 = scmp.eq.s32.totalorder %s15, 0
    %p84 = por %p82, %p83
    %s85 = ssub.s32 %s9, %s16
    %p86 = scmp.eq.s32.totalorder %s85, 0
    %s88 = sadd.s32 %s87, 1
    %s89 = scalar_select %p86, %s87, %s88
    %p92 = pneg %p86
    %p93 = scmp.eq.s32.totalorder %s9, 3
    %p94 = por %p92, %p93
    %p95 = scmp.ne.s32.totalorder %s87, %s90
    %p96 = scmp.eq.s32.totalorder %s9, 0
    %p97 = por %p95, %p96
    %p98 = scmp.ne.s32.totalorder %s87, %s90
    %p99 = scmp.eq.s32.totalorder %s14, 3
    %p100 = por %p98, %p99
    %p101 = scmp.ne.s32.totalorder %s90, %s91
    %p102 = scmp.eq.s32.totalorder %s14, 0
    %p103 = por %p101, %p102
    %p104 = scmp.ne.s32.totalorder %s90, %s91
    %p105 = scmp.eq.s32.totalorder %s15, 3
    %p106 = por %p104, %p105
    %p108 = scmp.ne.s32.totalorder %s91, %s107
    %p109 = scmp.eq.s32.totalorder %s15, 0
    %p110 = por %p108, %p109
    %p111 = scmp.le.s32.totalorder 1, %s9
    %p112 = scmp.lt.s32.totalorder %s9, 5
    %p113 = pnand %p111, %p112
    %p114 = pneg %p113
    // Predicated region
    $region9: #{feedforward_pallas.1} parent=5 // pred_check
      _
    $region10: #{feedforward_pallas.1} parent=5 // pred_check_branch
      %116 = sbr.rel (%p113) target = $region12
    $region11: #{feedforward_pallas.1} parent=5 // pred_region
      %s117 = ssub.s32 %s9, 1
      // Predicated region
      $region13: #{feedforward_pallas.1} parent=11 // pred_check
        %p118 = pneg %p56
      $region14: #{feedforward_pallas.1} parent=11 // pred_check_branch
        %120 = sbr.rel (%p118) target = $region16
      $region15: #{feedforward_pallas.1} parent=11 // pred_region
        _
      $region16: #{feedforward_pallas.1} parent=11 // pred_fallthru
        _
      // Predicated region
      $region17: #{feedforward_pallas.1} parent=11 // pred_check
        %p121 = pneg %p77
      $region18: #{feedforward_pallas.1} parent=11 // pred_check_branch
        %123 = sbr.rel (%p121) target = $region20
      $region19: #{feedforward_pallas.1} parent=11 // pred_region
        _
      $region20: #{feedforward_pallas.1} parent=11 // pred_fallthru
        _
    $region12: #{feedforward_pallas.1} parent=5 // pred_fallthru
      _
    %p124 = scmp.lt.s32.totalorder %s9, 4
    // Predicated region
    $region21: #{feedforward_pallas.1} parent=5 // pred_check
      %p125 = pneg %p124
    $region22: #{feedforward_pallas.1} parent=5 // pred_check_branch
      %127 = sbr.rel (%p125) target = $region24
    $region23: #{feedforward_pallas.1} parent=5 // pred_region
      // Predicated region
      $region25: #{feedforward_pallas.1} parent=23 // pred_check
        %p128 = pneg %p29
      $region26: #{feedforward_pallas.1} parent=23 // pred_check_branch
        %130 = sbr.rel (%p128) target = $region28
      $region27: #{feedforward_pallas.1} parent=23 // pred_region
        %s131 = smul.u32 16, %s9
        %p132 = scmp.lt.s32.totalorder %s131, 63
        %s133 = scalar_select %p132, %s131, 63
        %s134 = smul.addr %s133, 8
        %s135 = scalar_lea.vmem %s0, %s134
        %s136 = smul.u32 16, %s9
      $region28: #{feedforward_pallas.1} parent=23 // pred_fallthru
        _
    $region24: #{feedforward_pallas.1} parent=5 // pred_fallthru
      _
    %p137 = scmp.le.s32.totalorder 1, %s9
    %p138 = scmp.lt.s32.totalorder %s9, 5
    %p139 = pnand %p137, %p138
    %p140 = pneg %p139
    // Predicated region
    $region29: #{feedforward_pallas.1} parent=5 // pred_check
      _
    $region30: #{feedforward_pallas.1} parent=5 // pred_check_branch
      %142 = sbr.rel (%p139) target = $region32
    $region31: #{feedforward_pallas.1} parent=5 // pred_region
      %s143 = ssub.s32 %s9, 1
      %s144 = smul.u32 16, %s14
      %p145 = scmp.lt.s32.totalorder %s144, 63
      %s146 = scalar_select %p145, %s144, 63
      %s147 = smul.addr %s146, 8
      %s148 = scalar_lea.vmem %s0, %s147
      %p149 = pneg %p35
      %p150 = pneg %p32
      %p151 = pneg %p56
      %p152 = pneg %p53
      %p153 = pneg %p77
      %p154 = pneg %p74
      %p155 = pneg %p103
      %p156 = pneg %p100
      %s157 = smul.u32 16, %s14
      %p158 = scmp.lt.s32.totalorder %s157, 63
      %s159 = scalar_select %p158, %s157, 63
      %s160 = smul.addr %s159, 8
      %s161 = scalar_lea.vmem %s3, %s160
      %s162 = smul.u32 16, %s14
      %p163 = scmp.lt.s32.totalorder %s162, 63
      %s164 = scalar_select %p163, %s162, 63
      %s165 = smul.addr %s164, 8
      %s166 = scalar_lea.vmem %s0, %s165
      %s167 = smul.u32 16, %s14
      %s168 = smul.u32 16, %s14
      %p169 = scmp.lt.s32.totalorder %s168, 63
      %s170 = scalar_select %p169, %s168, 63
      %s171 = smul.addr %s170, 8
      %s172 = scalar_lea.vmem %s3, %s171
      %s173 = smul.u32 16, %s14
      %v174 = vld [vmem:[%s166] sm:$0xff]
      %v175 = vld [vmem:[%s166 + $0x8] sm:$0xff]
      %v176 = vld [vmem:[%s166 + $0x10] sm:$0xff]
      %v177 = vld [vmem:[%s166 + $0x18] sm:$0xff]
      %v178 = vld [vmem:[%s166 + $0x20] sm:$0xff]
      %v179 = vld [vmem:[%s166 + $0x28] sm:$0xff]
      %v180 = vld [vmem:[%s166 + $0x30] sm:$0xff]
      %v181 = vld [vmem:[%s166 + $0x38] sm:$0xff]
      %v182 = vld [vmem:[%s166 + $0x40] sm:$0xff]
      %v183 = vld [vmem:[%s166 + $0x48] sm:$0xff]
      %v184 = vld [vmem:[%s166 + $0x50] sm:$0xff]
      %v185 = vld [vmem:[%s166 + $0x58] sm:$0xff]
      %v186 = vld [vmem:[%s166 + $0x60] sm:$0xff]
      %v187 = vld [vmem:[%s166 + $0x68] sm:$0xff]
      %v188 = vld [vmem:[%s166 + $0x70] sm:$0xff]
      %v189 = vld [vmem:[%s166 + $0x78] sm:$0xff]
      %v190 = vld [vmem:[%s1] sm:$0xff]
      %v191 = vld [vmem:[%s1 + $0x8] sm:$0xff]
      %v192 = vld [vmem:[%s2] sm:$0x1]
      %v193 = vlaneseq
      %v194 = vshrl.u32 %v193, 7
      %v195 = vsub.s32 0, %v194
      %v196 = vrot.slane %v192, %v195
      %vm197 = vcmask 130048
      %v199 = vsel %vm197, %v174, 0
      %v202 = vsel %vm197, %v175, 0
      %v205 = vsel %vm197, %v176, 0
      %v208 = vsel %vm197, %v177, 0
      %v211 = vsel %vm197, %v178, 0
      %v214 = vsel %vm197, %v179, 0
      %v217 = vsel %vm197, %v180, 0
      %v220 = vsel %vm197, %v181, 0
      %v223 = vsel %vm197, %v182, 0
      %v226 = vsel %vm197, %v183, 0
      %v229 = vsel %vm197, %v184, 0
      %v232 = vsel %vm197, %v185, 0
      %v235 = vsel %vm197, %v186, 0
      %v238 = vsel %vm197, %v187, 0
      %v241 = vsel %vm197, %v188, 0
      %v244 = vsel %vm197, %v189, 0
      %246 = vmatprep.subr.mxu0 0.0
      %247 = vmatpush1.msra.mxu0 %v190
      %248 = vmatprep.subr.mxu0 0.0
      %249 = vmatpush1.msra.mxu0 %v191
      %250 = vmatprep.subr.mxu0 0.0
      %251 = vmatpush1.msra.mxu0 0.0
      %252 = vmatprep.subr.mxu0 0.0
      %253 = vmatpush1.msra.mxu0 0.0
      %254 = vmatprep.subr.mxu0 0.0
      %255 = vmatpush1.msra.mxu0 0.0
      %256 = vmatprep.subr.mxu0 0.0
      %257 = vmatpush1.msra.mxu0 0.0
      %258 = vmatprep.subr.mxu0 0.0
      %259 = vmatpush1.msra.mxu0 0.0
      %260 = vmatprep.subr.mxu0 0.0
      %261 = vmatpush1.msra.mxu0 0.0
      %262 = vmatprep.subr.mxu0 0.0
      %263 = vmatpush1.msra.mxu0 0.0
      %264 = vmatprep.subr.mxu0 0.0
      %265 = vmatpush1.msra.mxu0 0.0
      %266 = vmatprep.subr.mxu0 0.0
      %267 = vmatpush1.msra.mxu0 0.0
      %268 = vmatprep.subr.mxu0 0.0
      %269 = vmatpush1.msra.mxu0 0.0
      %270 = vmatprep.subr.mxu0 0.0
      %271 = vmatpush1.msra.mxu0 0.0
      %272 = vmatprep.subr.mxu0 0.0
      %273 = vmatpush1.msra.mxu0 0.0
      %274 = vmatprep.subr.mxu0 0.0
      %275 = vmatpush1.msra.mxu0 0.0
      %276 = vmatprep.subr.mxu0 0.0
      %277 = vmatpush1.msra.mxu0 0.0
      %278 = vmatprep.subr.mxu0 0.0
      %279 = vmatpush1.msra.mxu0 0.0
      %280 = vmatprep.subr.mxu0 0.0
      %281 = vmatpush1.msra.mxu0 0.0
      %282 = vmatprep.subr.mxu0 0.0
      %283 = vmatpush1.msra.mxu0 0.0
      %284 = vmatprep.subr.mxu0 0.0
      %285 = vmatpush1.msra.mxu0 0.0
      %286 = vmatprep.subr.mxu0 0.0
      %287 = vmatpush1.msra.mxu0 0.0
      %288 = vmatprep.subr.mxu0 0.0
      %289 = vmatpush1.msra.mxu0 0.0
      %290 = vmatprep.subr.mxu0 0.0
      %291 = vmatpush1.msra.mxu0 0.0
      %292 = vmatprep.subr.mxu0 0.0
      %293 = vmatpush1.msra.mxu0 0.0
      %294 = vmatprep.subr.mxu0 0.0
      %295 = vmatpush1.msra.mxu0 0.0
      %296 = vmatprep.subr.mxu0 0.0
      %297 = vmatpush1.msra.mxu0 0.0
      %298 = vmatprep.subr.mxu0 0.0
      %299 = vmatpush1.msra.mxu0 0.0
      %300 = vmatprep.subr.mxu0 0.0
      %301 = vmatpush1.msra.mxu0 0.0
      %302 = vmatprep.subr.mxu0 0.0
      %303 = vmatpush1.msra.mxu0 0.0
      %304 = vmatprep.subr.mxu0 0.0
      %305 = vmatpush1.msra.mxu0 0.0
      %306 = vmatprep.subr.mxu0 0.0
      %307 = vmatpush1.msra.mxu0 0.0
      %308 = vmatprep.subr.mxu0 0.0
      %309 = vmatpush1.msra.mxu0 0.0
      %310 = vmatprep.mubr.f32.mxu0 0.0
      %311 = vmatmul.mubr.f32.gmra.mrb[0].mxu0 %v199
      %v312 = vpop.f32.mrb[0].mxu0
      %v313 = vadd.f32 %v196, %v312
      %v314 = vpop.f32.mrb[0].mxu0
      %315 = vmatprep.mubr.f32.mxu0 0.0
      %316 = vmatmul.mubr.f32.gmra.mrb[0].mxu0 %v202
      %v317 = vpop.f32.mrb[0].mxu0
      %v318 = vadd.f32 %v196, %v317
      %v319 = vpop.f32.mrb[0].mxu0
      %320 = vmatprep.mubr.f32.mxu0 0.0
      %321 = vmatmul.mubr.f32.gmra.mrb[0].mxu0 %v205
      %v322 = vpop.f32.mrb[0].mxu0
      %v323 = vadd.f32 %v196, %v322
      %v324 = vpop.f32.mrb[0].mxu0
      %325 = vmatprep.mubr.f32.mxu0 0.0
      %326 = vmatmul.mubr.f32.gmra.mrb[0].mxu0 %v208
      %v327 = vpop.f32.mrb[0].mxu0
      %v328 = vadd.f32 %v196, %v327
      %v329 = vpop.f32.mrb[0].mxu0
      %330 = vmatprep.mubr.f32.mxu0 0.0
      %331 = vmatmul.mubr.f32.gmra.mrb[0].mxu0 %v211
      %v332 = vpop.f32.mrb[0].mxu0
      %v333 = vadd.f32 %v196, %v332
      %v334 = vpop.f32.mrb[0].mxu0
      %335 = vmatprep.mubr.f32.mxu0 0.0
      %336 = vmatmul.mubr.f32.gmra.mrb[0].mxu0 %v214
      %v337 = vpop.f32.mrb[0].mxu0
      %v338 = vadd.f32 %v196, %v337
      %v339 = vpop.f32.mrb[0].mxu0
      %340 = vmatprep.mubr.f32.mxu0 0.0
      %341 = vmatmul.mubr.f32.gmra.mrb[0].mxu0 %v217
      %v342 = vpop.f32.mrb[0].mxu0
      %v343 = vadd.f32 %v196, %v342
      %v344 = vpop.f32.mrb[0].mxu0
      %345 = vmatprep.mubr.f32.mxu0 0.0
      %346 = vmatmul.mubr.f32.gmra.mrb[0].mxu0 %v220
      %v347 = vpop.f32.mrb[0].mxu0
      %v348 = vadd.f32 %v196, %v347
      %v349 = vpop.f32.mrb[0].mxu0
      %350 = vmatprep.mubr.f32.mxu0 0.0
      %351 = vmatmul.mubr.f32.gmra.mrb[0].mxu0 %v223
      %v352 = vpop.f32.mrb[0].mxu0
      %v353 = vadd.f32 %v196, %v352
      %v354 = vpop.f32.mrb[0].mxu0
      %355 = vmatprep.mubr.f32.mxu0 0.0
      %356 = vmatmul.mubr.f32.gmra.mrb[0].mxu0 %v226
      %v357 = vpop.f32.mrb[0].mxu0
      %v358 = vadd.f32 %v196, %v357
      %v359 = vpop.f32.mrb[0].mxu0
      %360 = vmatprep.mubr.f32.mxu0 0.0
      %361 = vmatmul.mubr.f32.gmra.mrb[0].mxu0 %v229
      %v362 = vpop.f32.mrb[0].mxu0
      %v363 = vadd.f32 %v196, %v362
      %v364 = vpop.f32.mrb[0].mxu0
      %365 = vmatprep.mubr.f32.mxu0 0.0
      %366 = vmatmul.mubr.f32.gmra.mrb[0].mxu0 %v232
      %v367 = vpop.f32.mrb[0].mxu0
      %v368 = vadd.f32 %v196, %v367
      %v369 = vpop.f32.mrb[0].mxu0
      %370 = vmatprep.mubr.f32.mxu0 0.0
      %371 = vmatmul.mubr.f32.gmra.mrb[0].mxu0 %v235
      %v372 = vpop.f32.mrb[0].mxu0
      %v373 = vadd.f32 %v196, %v372
      %v374 = vpop.f32.mrb[0].mxu0
      %375 = vmatprep.mubr.f32.mxu0 0.0
      %376 = vmatmul.mubr.f32.gmra.mrb[0].mxu0 %v238
      %v377 = vpop.f32.mrb[0].mxu0
      %v378 = vadd.f32 %v196, %v377
      %v379 = vpop.f32.mrb[0].mxu0
      %380 = vmatprep.mubr.f32.mxu0 0.0
      %381 = vmatmul.mubr.f32.gmra.mrb[0].mxu0 %v241
      %v382 = vpop.f32.mrb[0].mxu0
      %v383 = vadd.f32 %v196, %v382
      %v384 = vpop.f32.mrb[0].mxu0
      %385 = vmatprep.mubr.f32.mxu0 0.0
      %386 = vmatmul.mubr.f32.gmra.mrb[0].mxu0 %v244
      %v387 = vpop.f32.mrb[0].mxu0
      %v388 = vadd.f32 %v196, %v387
      %v389 = vpop.f32.mrb[0].mxu0
      %390 = vdwg.mxu0
      %s391 = scalar_lea.vmem %s1, 32
      %v392 = vld [vmem:[%s391] sm:$0xff]
      %v393 = vld [vmem:[%s391 + $0x8] sm:$0xff]
      %v394 = vld [vmem:[%s391 + $0x10] sm:$0xff]
      %v395 = vld [vmem:[%s391 + $0x18] sm:$0xff]
      %v396 = vld [vmem:[%s2 + $0x1] sm:$0x1]
      %v397 = vlaneseq
      %v398 = vshrl.u32 %v397, 7
      %v399 = vsub.s32 0, %v398
      %v400 = vrot.slane %v396, %v399
      %vm401 = vcmask 261120
      %v403 = vsel %vm401, %v313, 0
      %v406 = vsel %vm401, %v318, 0
      %v409 = vsel %vm401, %v323, 0
      %v412 = vsel %vm401, %v328, 0
      %v415 = vsel %vm401, %v333, 0
      %v418 = vsel %vm401, %v338, 0
      %v421 = vsel %vm401, %v343, 0
      %v424 = vsel %vm401, %v348, 0
      %v427 = vsel %vm401, %v353, 0
      %v430 = vsel %vm401, %v358, 0
      %v433 = vsel %vm401, %v363, 0
      %v436 = vsel %vm401, %v368, 0
      %v439 = vsel %vm401, %v373, 0
      %v442 = vsel %vm401, %v378, 0
      %v445 = vsel %vm401, %v383, 0
      %v448 = vsel %vm401, %v388, 0
      %450 = vmatprep.subr.mxu0 0.0
      %451 = vmatpush1.msra.mxu0 %v392
      %452 = vmatprep.subr.mxu0 0.0
      %453 = vmatpush1.msra.mxu0 %v393
      %454 = vmatprep.subr.mxu0 0.0
      %455 = vmatpush1.msra.mxu0 %v394
      %456 = vmatprep.subr.mxu0 0.0
      %457 = vmatpush1.msra.mxu0 %v395
      %458 = vmatprep.subr.mxu0 0.0
      %459 = vmatpush1.msra.mxu0 0.0
      %460 = vmatprep.subr.mxu0 0.0
      %461 = vmatpush1.msra.mxu0 0.0
      %462 = vmatprep.subr.mxu0 0.0
      %463 = vmatpush1.msra.mxu0 0.0
      %464 = vmatprep.subr.mxu0 0.0
      %465 = vmatpush1.msra.mxu0 0.0
      %466 = vmatprep.subr.mxu0 0.0
      %467 = vmatpush1.msra.mxu0 0.0
      %468 = vmatprep.subr.mxu0 0.0
      %469 = vmatpush1.msra.mxu0 0.0
      %470 = vmatprep.subr.mxu0 0.0
      %471 = vmatpush1.msra.mxu0 0.0
      %472 = vmatprep.subr.mxu0 0.0
      %473 = vmatpush1.msra.mxu0 0.0
      %474 = vmatprep.subr.mxu0 0.0
      %475 = vmatpush1.msra.mxu0 0.0
      %476 = vmatprep.subr.mxu0 0.0
      %477 = vmatpush1.msra.mxu0 0.0
      %478 = vmatprep.subr.mxu0 0.0
      %479 = vmatpush1.msra.mxu0 0.0
      %480 = vmatprep.subr.mxu0 0.0
      %481 = vmatpush1.msra.mxu0 0.0
      %482 = vmatprep.subr.mxu0 0.0
      %483 = vmatpush1.msra.mxu0 0.0
      %484 = vmatprep.subr.mxu0 0.0
      %485 = vmatpush1.msra.mxu0 0.0
      %486 = vmatprep.subr.mxu0 0.0
      %487 = vmatpush1.msra.mxu0 0.0
      %488 = vmatprep.subr.mxu0 0.0
      %489 = vmatpush1.msra.mxu0 0.0
      %490 = vmatprep.subr.mxu0 0.0
      %491 = vmatpush1.msra.mxu0 0.0
      %492 = vmatprep.subr.mxu0 0.0
      %493 = vmatpush1.msra.mxu0 0.0
      %494 = vmatprep.subr.mxu0 0.0
      %495 = vmatpush1.msra.mxu0 0.0
      %496 = vmatprep.subr.mxu0 0.0
      %497 = vmatpush1.msra.mxu0 0.0
      %498 = vmatprep.subr.mxu0 0.0
      %499 = vmatpush1.msra.mxu0 0.0
      %500 = vmatprep.subr.mxu0 0.0
      %501 = vmatpush1.msra.mxu0 0.0
      %502 = vmatprep.subr.mxu0 0.0
      %503 = vmatpush1.msra.mxu0 0.0
      %504 = vmatprep.subr.mxu0 0.0
      %505 = vmatpush1.msra.mxu0 0.0
      %506 = vmatprep.subr.mxu0 0.0
      %507 = vmatpush1.msra.mxu0 0.0
      %508 = vmatprep.subr.mxu0 0.0
      %509 = vmatpush1.msra.mxu0 0.0
      %510 = vmatprep.subr.mxu0 0.0
      %511 = vmatpush1.msra.mxu0 0.0
      %512 = vmatprep.subr.mxu0 0.0
      %513 = vmatpush1.msra.mxu0 0.0
      %514 = vmatprep.mubr.f32.mxu0 0.0
      %515 = vmatmul.mubr.f32.gmra.mrb[0].mxu0 %v403
      %v516 = vpop.f32.mrb[0].mxu0
      %v517 = vadd.f32 %v400, %v516
      %v518 = vpop.f32.mrb[0].mxu0
      %519 = vmatprep.mubr.f32.mxu0 0.0
      %520 = vmatmul.mubr.f32.gmra.mrb[0].mxu0 %v406
      %v521 = vpop.f32.mrb[0].mxu0
      %v522 = vadd.f32 %v400, %v521
      %v523 = vpop.f32.mrb[0].mxu0
      %524 = vmatprep.mubr.f32.mxu0 0.0
      %525 = vmatmul.mubr.f32.gmra.mrb[0].mxu0 %v409
      %v526 = vpop.f32.mrb[0].mxu0
      %v527 = vadd.f32 %v400, %v526
      %v528 = vpop.f32.mrb[0].mxu0
      %529 = vmatprep.mubr.f32.mxu0 0.0
      %530 = vmatmul.mubr.f32.gmra.mrb[0].mxu0 %v412
      %v531 = vpop.f32.mrb[0].mxu0
      %v532 = vadd.f32 %v400, %v531
      %v533 = vpop.f32.mrb[0].mxu0
      %534 = vmatprep.mubr.f32.mxu0 0.0
      %535 = vmatmul.mubr.f32.gmra.mrb[0].mxu0 %v415
      %v536 = vpop.f32.mrb[0].mxu0
      %v537 = vadd.f32 %v400, %v536
      %v538 = vpop.f32.mrb[0].mxu0
      %539 = vmatprep.mubr.f32.mxu0 0.0
      %540 = vmatmul.mubr.f32.gmra.mrb[0].mxu0 %v418
      %v541 = vpop.f32.mrb[0].mxu0
      %v542 = vadd.f32 %v400, %v541
      %v543 = vpop.f32.mrb[0].mxu0
      %544 = vmatprep.mubr.f32.mxu0 0.0
      %545 = vmatmul.mubr.f32.gmra.mrb[0].mxu0 %v421
      %v546 = vpop.f32.mrb[0].mxu0
      %v547 = vadd.f32 %v400, %v546
      %v548 = vpop.f32.mrb[0].mxu0
      %549 = vmatprep.mubr.f32.mxu0 0.0
      %550 = vmatmul.mubr.f32.gmra.mrb[0].mxu0 %v424
      %v551 = vpop.f32.mrb[0].mxu0
      %v552 = vadd.f32 %v400, %v551
      %v553 = vpop.f32.mrb[0].mxu0
      %554 = vmatprep.mubr.f32.mxu0 0.0
      %555 = vmatmul.mubr.f32.gmra.mrb[0].mxu0 %v427
      %v556 = vpop.f32.mrb[0].mxu0
      %v557 = vadd.f32 %v400, %v556
      %v558 = vpop.f32.mrb[0].mxu0
      %559 = vmatprep.mubr.f32.mxu0 0.0
      %560 = vmatmul.mubr.f32.gmra.mrb[0].mxu0 %v430
      %v561 = vpop.f32.mrb[0].mxu0
      %v562 = vadd.f32 %v400, %v561
      %v563 = vpop.f32.mrb[0].mxu0
      %564 = vmatprep.mubr.f32.mxu0 0.0
      %565 = vmatmul.mubr.f32.gmra.mrb[0].mxu0 %v433
      %v566 = vpop.f32.mrb[0].mxu0
      %v567 = vadd.f32 %v400, %v566
      %v568 = vpop.f32.mrb[0].mxu0
      %569 = vmatprep.mubr.f32.mxu0 0.0
      %570 = vmatmul.mubr.f32.gmra.mrb[0].mxu0 %v436
      %v571 = vpop.f32.mrb[0].mxu0
      %v572 = vadd.f32 %v400, %v571
      %v573 = vpop.f32.mrb[0].mxu0
      %574 = vmatprep.mubr.f32.mxu0 0.0
      %575 = vmatmul.mubr.f32.gmra.mrb[0].mxu0 %v439
      %v576 = vpop.f32.mrb[0].mxu0
      %v577 = vadd.f32 %v400, %v576
      %v578 = vpop.f32.mrb[0].mxu0
      %579 = vmatprep.mubr.f32.mxu0 0.0
      %580 = vmatmul.mubr.f32.gmra.mrb[0].mxu0 %v442
      %v581 = vpop.f32.mrb[0].mxu0
      %v582 = vadd.f32 %v400, %v581
      %v583 = vpop.f32.mrb[0].mxu0
      %584 = vmatprep.mubr.f32.mxu0 0.0
      %585 = vmatmul.mubr.f32.gmra.mrb[0].mxu0 %v445
      %v586 = vpop.f32.mrb[0].mxu0
      %v587 = vadd.f32 %v400, %v586
      %v588 = vpop.f32.mrb[0].mxu0
      %589 = vmatprep.mubr.f32.mxu0 0.0
      %590 = vmatmul.mubr.f32.gmra.mrb[0].mxu0 %v448
      %v591 = vpop.f32.mrb[0].mxu0
      %v592 = vadd.f32 %v400, %v591
      %v593 = vpop.f32.mrb[0].mxu0
      %594 = vdwg.mxu0
      %v595 = vmax.f32 %v517, 0.0
      %v596 = vmax.f32 %v522, 0.0
      %v597 = vmax.f32 %v527, 0.0
      %v598 = vmax.f32 %v532, 0.0
      %v599 = vmax.f32 %v537, 0.0
      %v600 = vmax.f32 %v542, 0.0
      %v601 = vmax.f32 %v547, 0.0
      %v602 = vmax.f32 %v552, 0.0
      %v603 = vmax.f32 %v557, 0.0
      %v604 = vmax.f32 %v562, 0.0
      %v605 = vmax.f32 %v567, 0.0
      %v606 = vmax.f32 %v572, 0.0
      %v607 = vmax.f32 %v577, 0.0
      %v608 = vmax.f32 %v582, 0.0
      %v609 = vmax.f32 %v587, 0.0
      %v610 = vmax.f32 %v592, 0.0
      %s611 = scalar_lea.vmem %s1, 64
      %v612 = vld [vmem:[%s611] sm:$0xff]
      %v613 = vld [vmem:[%s611 + $0x8] sm:$0xff]
      %v614 = vld [vmem:[%s611 + $0x10] sm:$0xff]
      %v615 = vld [vmem:[%s611 + $0x18] sm:$0xff]
      %v616 = vld [vmem:[%s2 + $0x2] sm:$0x1]
      %v617 = vlaneseq
      %v618 = vshrl.u32 %v617, 7
      %v619 = vsub.s32 0, %v618
      %v620 = vrot.slane %v616, %v619
      %v622 = vsel %vm401, %v595, 0
      %v625 = vsel %vm401, %v596, 0
      %v628 = vsel %vm401, %v597, 0
      %v631 = vsel %vm401, %v598, 0
      %v634 = vsel %vm401, %v599, 0
      %v637 = vsel %vm401, %v600, 0
      %v640 = vsel %vm401, %v601, 0
      %v643 = vsel %vm401, %v602, 0
      %v646 = vsel %vm401, %v603, 0
      %v649 = vsel %vm401, %v604, 0
      %v652 = vsel %vm401, %v605, 0
      %v655 = vsel %vm401, %v606, 0
      %v658 = vsel %vm401, %v607, 0
      %v661 = vsel %vm401, %v608, 0
      %v664 = vsel %vm401, %v609, 0
      %v667 = vsel %vm401, %v610, 0
      %669 = vmatprep.subr.mxu0 0.0
      %670 = vmatpush1.msra.mxu0 %v612
      %671 = vmatprep.subr.mxu0 0.0
      %672 = vmatpush1.msra.mxu0 %v613
      %673 = vmatprep.subr.mxu0 0.0
      %674 = vmatpush1.msra.mxu0 %v614
      %675 = vmatprep.subr.mxu0 0.0
      %676 = vmatpush1.msra.mxu0 %v615
      %677 = vmatprep.subr.mxu0 0.0
      %678 = vmatpush1.msra.mxu0 0.0
      %679 = vmatprep.subr.mxu0 0.0
      %680 = vmatpush1.msra.mxu0 0.0
      %681 = vmatprep.subr.mxu0 0.0
      %682 = vmatpush1.msra.mxu0 0.0
      %683 = vmatprep.subr.mxu0 0.0
      %684 = vmatpush1.msra.mxu0 0.0
      %685 = vmatprep.subr.mxu0 0.0
      %686 = vmatpush1.msra.mxu0 0.0
      %687 = vmatprep.subr.mxu0 0.0
      %688 = vmatpush1.msra.mxu0 0.0
      %689 = vmatprep.subr.mxu0 0.0
      %690 = vmatpush1.msra.mxu0 0.0
      %691 = vmatprep.subr.mxu0 0.0
      %692 = vmatpush1.msra.mxu0 0.0
      %693 = vmatprep.subr.mxu0 0.0
      %694 = vmatpush1.msra.mxu0 0.0
      %695 = vmatprep.subr.mxu0 0.0
      %696 = vmatpush1.msra.mxu0 0.0
      %697 = vmatprep.subr.mxu0 0.0
      %698 = vmatpush1.msra.mxu0 0.0
      %699 = vmatprep.subr.mxu0 0.0
      %700 = vmatpush1.msra.mxu0 0.0
      %701 = vmatprep.subr.mxu0 0.0
      %702 = vmatpush1.msra.mxu0 0.0
      %703 = vmatprep.subr.mxu0 0.0
      %704 = vmatpush1.msra.mxu0 0.0
      %705 = vmatprep.subr.mxu0 0.0
      %706 = vmatpush1.msra.mxu0 0.0
      %707 = vmatprep.subr.mxu0 0.0
      %708 = vmatpush1.msra.mxu0 0.0
      %709 = vmatprep.subr.mxu0 0.0
      %710 = vmatpush1.msra.mxu0 0.0
      %711 = vmatprep.subr.mxu0 0.0
      %712 = vmatpush1.msra.mxu0 0.0
      %713 = vmatprep.subr.mxu0 0.0
      %714 = vmatpush1.msra.mxu0 0.0
      %715 = vmatprep.subr.mxu0 0.0
      %716 = vmatpush1.msra.mxu0 0.0
      %717 = vmatprep.subr.mxu0 0.0
      %718 = vmatpush1.msra.mxu0 0.0
      %719 = vmatprep.subr.mxu0 0.0
      %720 = vmatpush1.msra.mxu0 0.0
      %721 = vmatprep.subr.mxu0 0.0
      %722 = vmatpush1.msra.mxu0 0.0
      %723 = vmatprep.subr.mxu0 0.0
      %724 = vmatpush1.msra.mxu0 0.0
      %725 = vmatprep.subr.mxu0 0.0
      %726 = vmatpush1.msra.mxu0 0.0
      %727 = vmatprep.subr.mxu0 0.0
      %728 = vmatpush1.msra.mxu0 0.0
      %729 = vmatprep.subr.mxu0 0.0
      %730 = vmatpush1.msra.mxu0 0.0
      %731 = vmatprep.subr.mxu0 0.0
      %732 = vmatpush1.msra.mxu0 0.0
      %733 = vmatprep.mubr.f32.mxu0 0.0
      %734 = vmatmul.mubr.f32.gmra.mrb[0].mxu0 %v622
      %v735 = vpop.f32.mrb[0].mxu0
      %v736 = vadd.f32 %v620, %v735
      %v737 = vpop.f32.mrb[0].mxu0
      %738 = vmatprep.mubr.f32.mxu0 0.0
      %739 = vmatmul.mubr.f32.gmra.mrb[0].mxu0 %v625
      %v740 = vpop.f32.mrb[0].mxu0
      %v741 = vadd.f32 %v620, %v740
      %v742 = vpop.f32.mrb[0].mxu0
      %743 = vmatprep.mubr.f32.mxu0 0.0
      %744 = vmatmul.mubr.f32.gmra.mrb[0].mxu0 %v628
      %v745 = vpop.f32.mrb[0].mxu0
      %v746 = vadd.f32 %v620, %v745
      %v747 = vpop.f32.mrb[0].mxu0
      %748 = vmatprep.mubr.f32.mxu0 0.0
      %749 = vmatmul.mubr.f32.gmra.mrb[0].mxu0 %v631
      %v750 = vpop.f32.mrb[0].mxu0
      %v751 = vadd.f32 %v620, %v750
      %v752 = vpop.f32.mrb[0].mxu0
      %753 = vmatprep.mubr.f32.mxu0 0.0
      %754 = vmatmul.mubr.f32.gmra.mrb[0].mxu0 %v634
      %v755 = vpop.f32.mrb[0].mxu0
      %v756 = vadd.f32 %v620, %v755
      %v757 = vpop.f32.mrb[0].mxu0
      %758 = vmatprep.mubr.f32.mxu0 0.0
      %759 = vmatmul.mubr.f32.gmra.mrb[0].mxu0 %v637
      %v760 = vpop.f32.mrb[0].mxu0
      %v761 = vadd.f32 %v620, %v760
      %v762 = vpop.f32.mrb[0].mxu0
      %763 = vmatprep.mubr.f32.mxu0 0.0
      %764 = vmatmul.mubr.f32.gmra.mrb[0].mxu0 %v640
      %v765 = vpop.f32.mrb[0].mxu0
      %v766 = vadd.f32 %v620, %v765
      %v767 = vpop.f32.mrb[0].mxu0
      %768 = vmatprep.mubr.f32.mxu0 0.0
      %769 = vmatmul.mubr.f32.gmra.mrb[0].mxu0 %v643
      %v770 = vpop.f32.mrb[0].mxu0
      %v771 = vadd.f32 %v620, %v770
      %v772 = vpop.f32.mrb[0].mxu0
      %773 = vmatprep.mubr.f32.mxu0 0.0
      %774 = vmatmul.mubr.f32.gmra.mrb[0].mxu0 %v646
      %v775 = vpop.f32.mrb[0].mxu0
      %v776 = vadd.f32 %v620, %v775
      %v777 = vpop.f32.mrb[0].mxu0
      %778 = vmatprep.mubr.f32.mxu0 0.0
      %779 = vmatmul.mubr.f32.gmra.mrb[0].mxu0 %v649
      %v780 = vpop.f32.mrb[0].mxu0
      %v781 = vadd.f32 %v620, %v780
      %v782 = vpop.f32.mrb[0].mxu0
      %783 = vmatprep.mubr.f32.mxu0 0.0
      %784 = vmatmul.mubr.f32.gmra.mrb[0].mxu0 %v652
      %v785 = vpop.f32.mrb[0].mxu0
      %v786 = vadd.f32 %v620, %v785
      %v787 = vpop.f32.mrb[0].mxu0
      %788 = vmatprep.mubr.f32.mxu0 0.0
      %789 = vmatmul.mubr.f32.gmra.mrb[0].mxu0 %v655
      %v790 = vpop.f32.mrb[0].mxu0
      %v791 = vadd.f32 %v620, %v790
      %v792 = vpop.f32.mrb[0].mxu0
      %793 = vmatprep.mubr.f32.mxu0 0.0
      %794 = vmatmul.mubr.f32.gmra.mrb[0].mxu0 %v658
      %v795 = vpop.f32.mrb[0].mxu0
      %v796 = vadd.f32 %v620, %v795
      %v797 = vpop.f32.mrb[0].mxu0
      %798 = vmatprep.mubr.f32.mxu0 0.0
      %799 = vmatmul.mubr.f32.gmra.mrb[0].mxu0 %v661
      %v800 = vpop.f32.mrb[0].mxu0
      %v801 = vadd.f32 %v620, %v800
      %v802 = vpop.f32.mrb[0].mxu0
      %803 = vmatprep.mubr.f32.mxu0 0.0
      %804 = vmatmul.mubr.f32.gmra.mrb[0].mxu0 %v664
      %v805 = vpop.f32.mrb[0].mxu0
      %v806 = vadd.f32 %v620, %v805
      %v807 = vpop.f32.mrb[0].mxu0
      %808 = vmatprep.mubr.f32.mxu0 0.0
      %809 = vmatmul.mubr.f32.gmra.mrb[0].mxu0 %v667
      %v810 = vpop.f32.mrb[0].mxu0
      %v811 = vadd.f32 %v620, %v810
      %v812 = vpop.f32.mrb[0].mxu0
      %813 = vdwg.mxu0
      %v814 = vmax.f32 %v736, 0.0
      %v815 = vmax.f32 %v741, 0.0
      %v816 = vmax.f32 %v746, 0.0
      %v817 = vmax.f32 %v751, 0.0
      %v818 = vmax.f32 %v756, 0.0
      %v819 = vmax.f32 %v761, 0.0
      %v820 = vmax.f32 %v766, 0.0
      %v821 = vmax.f32 %v771, 0.0
      %v822 = vmax.f32 %v776, 0.0
      %v823 = vmax.f32 %v781, 0.0
      %v824 = vmax.f32 %v786, 0.0
      %v825 = vmax.f32 %v791, 0.0
      %v826 = vmax.f32 %v796, 0.0
      %v827 = vmax.f32 %v801, 0.0
      %v828 = vmax.f32 %v806, 0.0
      %v829 = vmax.f32 %v811, 0.0
      %v830 = vadd.f32 %v313, %v814
      %v831 = vadd.f32 %v318, %v815
      %v832 = vadd.f32 %v323, %v816
      %v833 = vadd.f32 %v328, %v817
      %v834 = vadd.f32 %v333, %v818
      %v835 = vadd.f32 %v338, %v819
      %v836 = vadd.f32 %v343, %v820
      %v837 = vadd.f32 %v348, %v821
      %v838 = vadd.f32 %v353, %v822
      %v839 = vadd.f32 %v358, %v823
      %v840 = vadd.f32 %v363, %v824
      %v841 = vadd.f32 %v368, %v825
      %v842 = vadd.f32 %v373, %v826
      %v843 = vadd.f32 %v378, %v827
      %v844 = vadd.f32 %v383, %v828
      %v845 = vadd.f32 %v388, %v829
      %s846 = scalar_lea.vmem %s1, 96
      %v847 = vld [vmem:[%s846] sm:$0xff]
      %v848 = vld [vmem:[%s846 + $0x8] sm:$0xff]
      %v849 = vld [vmem:[%s846 + $0x10] sm:$0xff]
      %v850 = vld [vmem:[%s846 + $0x18] sm:$0xff]
      %v851 = vld [vmem:[%s2 + $0x3] sm:$0x1]
      %v852 = vlaneseq
      %v853 = vshrl.u32 %v852, 7
      %v854 = vsub.s32 0, %v853
      %v855 = vrot.slane %v851, %v854
      %v857 = vsel %vm401, %v830, 0
      %v860 = vsel %vm401, %v831, 0
      %v863 = vsel %vm401, %v832, 0
      %v866 = vsel %vm401, %v833, 0
      %v869 = vsel %vm401, %v834, 0
      %v872 = vsel %vm401, %v835, 0
      %v875 = vsel %vm401, %v836, 0
      %v878 = vsel %vm401, %v837, 0
      %v881 = vsel %vm401, %v838, 0
      %v884 = vsel %vm401, %v839, 0
      %v887 = vsel %vm401, %v840, 0
      %v890 = vsel %vm401, %v841, 0
      %v893 = vsel %vm401, %v842, 0
      %v896 = vsel %vm401, %v843, 0
      %v899 = vsel %vm401, %v844, 0
      %v902 = vsel %vm401, %v845, 0
      %904 = vmatprep.subr.mxu0 0.0
      %905 = vmatpush1.msra.mxu0 %v847
      %906 = vmatprep.subr.mxu0 0.0
      %907 = vmatpush1.msra.mxu0 %v848
      %908 = vmatprep.subr.mxu0 0.0
      %909 = vmatpush1.msra.mxu0 %v849
      %910 = vmatprep.subr.mxu0 0.0
      %911 = vmatpush1.msra.mxu0 %v850
      %912 = vmatprep.subr.mxu0 0.0
      %913 = vmatpush1.msra.mxu0 0.0
      %914 = vmatprep.subr.mxu0 0.0
      %915 = vmatpush1.msra.mxu0 0.0
      %916 = vmatprep.subr.mxu0 0.0
      %917 = vmatpush1.msra.mxu0 0.0
      %918 = vmatprep.subr.mxu0 0.0
      %919 = vmatpush1.msra.mxu0 0.0
      %920 = vmatprep.subr.mxu0 0.0
      %921 = vmatpush1.msra.mxu0 0.0
      %922 = vmatprep.subr.mxu0 0.0
      %923 = vmatpush1.msra.mxu0 0.0
      %924 = vmatprep.subr.mxu0 0.0
      %925 = vmatpush1.msra.mxu0 0.0
      %926 = vmatprep.subr.mxu0 0.0
      %927 = vmatpush1.msra.mxu0 0.0
      %928 = vmatprep.subr.mxu0 0.0
      %929 = vmatpush1.msra.mxu0 0.0
      %930 = vmatprep.subr.mxu0 0.0
      %931 = vmatpush1.msra.mxu0 0.0
      %932 = vmatprep.subr.mxu0 0.0
      %933 = vmatpush1.msra.mxu0 0.0
      %934 = vmatprep.subr.mxu0 0.0
      %935 = vmatpush1.msra.mxu0 0.0
      %936 = vmatprep.subr.mxu0 0.0
      %937 = vmatpush1.msra.mxu0 0.0
      %938 = vmatprep.subr.mxu0 0.0
      %939 = vmatpush1.msra.mxu0 0.0
      %940 = vmatprep.subr.mxu0 0.0
      %941 = vmatpush1.msra.mxu0 0.0
      %942 = vmatprep.subr.mxu0 0.0
      %943 = vmatpush1.msra.mxu0 0.0
      %944 = vmatprep.subr.mxu0 0.0
      %945 = vmatpush1.msra.mxu0 0.0
      %946 = vmatprep.subr.mxu0 0.0
      %947 = vmatpush1.msra.mxu0 0.0
      %948 = vmatprep.subr.mxu0 0.0
      %949 = vmatpush1.msra.mxu0 0.0
      %950 = vmatprep.subr.mxu0 0.0
      %951 = vmatpush1.msra.mxu0 0.0
      %952 = vmatprep.subr.mxu0 0.0
      %953 = vmatpush1.msra.mxu0 0.0
      %954 = vmatprep.subr.mxu0 0.0
      %955 = vmatpush1.msra.mxu0 0.0
      %956 = vmatprep.subr.mxu0 0.0
      %957 = vmatpush1.msra.mxu0 0.0
      %958 = vmatprep.subr.mxu0 0.0
      %959 = vmatpush1.msra.mxu0 0.0
      %960 = vmatprep.subr.mxu0 0.0
      %961 = vmatpush1.msra.mxu0 0.0
      %962 = vmatprep.subr.mxu0 0.0
      %963 = vmatpush1.msra.mxu0 0.0
      %964 = vmatprep.subr.mxu0 0.0
      %965 = vmatpush1.msra.mxu0 0.0
      %966 = vmatprep.subr.mxu0 0.0
      %967 = vmatpush1.msra.mxu0 0.0
      %968 = vmatprep.mubr.f32.mxu0 0.0
      %969 = vmatmul.mubr.f32.gmra.mrb[0].mxu0 %v857
      %v970 = vpop.f32.mrb[0].mxu0
      %v971 = vadd.f32 %v855, %v970
      %v972 = vpop.f32.mrb[0].mxu0
      %973 = vmatprep.mubr.f32.mxu0 0.0
      %974 = vmatmul.mubr.f32.gmra.mrb[0].mxu0 %v860
      %v975 = vpop.f32.mrb[0].mxu0
      %v976 = vadd.f32 %v855, %v975
      %v977 = vpop.f32.mrb[0].mxu0
      %978 = vmatprep.mubr.f32.mxu0 0.0
      %979 = vmatmul.mubr.f32.gmra.mrb[0].mxu0 %v863
      %v980 = vpop.f32.mrb[0].mxu0
      %v981 = vadd.f32 %v855, %v980
      %v982 = vpop.f32.mrb[0].mxu0
      %983 = vmatprep.mubr.f32.mxu0 0.0
      %984 = vmatmul.mubr.f32.gmra.mrb[0].mxu0 %v866
      %v985 = vpop.f32.mrb[0].mxu0
      %v986 = vadd.f32 %v855, %v985
      %v987 = vpop.f32.mrb[0].mxu0
      %988 = vmatprep.mubr.f32.mxu0 0.0
      %989 = vmatmul.mubr.f32.gmra.mrb[0].mxu0 %v869
      %v990 = vpop.f32.mrb[0].mxu0
      %v991 = vadd.f32 %v855, %v990
      %v992 = vpop.f32.mrb[0].mxu0
      %993 = vmatprep.mubr.f32.mxu0 0.0
      %994 = vmatmul.mubr.f32.gmra.mrb[0].mxu0 %v872
      %v995 = vpop.f32.mrb[0].mxu0
      %v996 = vadd.f32 %v855, %v995
      %v997 = vpop.f32.mrb[0].mxu0
      %998 = vmatprep.mubr.f32.mxu0 0.0
      %999 = vmatmul.mubr.f32.gmra.mrb[0].mxu0 %v875
      %v1000 = vpop.f32.mrb[0].mxu0
      %v1001 = vadd.f32 %v855, %v1000
      %v1002 = vpop.f32.mrb[0].mxu0
      %1003 = vmatprep.mubr.f32.mxu0 0.0
      %1004 = vmatmul.mubr.f32.gmra.mrb[0].mxu0 %v878
      %v1005 = vpop.f32.mrb[0].mxu0
      %v1006 = vadd.f32 %v855, %v1005
      %v1007 = vpop.f32.mrb[0].mxu0
      %1008 = vmatprep.mubr.f32.mxu0 0.0
      %1009 = vmatmul.mubr.f32.gmra.mrb[0].mxu0 %v881
      %v1010 = vpop.f32.mrb[0].mxu0
      %v1011 = vadd.f32 %v855, %v1010
      %v1012 = vpop.f32.mrb[0].mxu0
      %1013 = vmatprep.mubr.f32.mxu0 0.0
      %1014 = vmatmul.mubr.f32.gmra.mrb[0].mxu0 %v884
      %v1015 = vpop.f32.mrb[0].mxu0
      %v1016 = vadd.f32 %v855, %v1015
      %v1017 = vpop.f32.mrb[0].mxu0
      %1018 = vmatprep.mubr.f32.mxu0 0.0
      %1019 = vmatmul.mubr.f32.gmra.mrb[0].mxu0 %v887
      %v1020 = vpop.f32.mrb[0].mxu0
      %v1021 = vadd.f32 %v855, %v1020
      %v1022 = vpop.f32.mrb[0].mxu0
      %1023 = vmatprep.mubr.f32.mxu0 0.0
      %1024 = vmatmul.mubr.f32.gmra.mrb[0].mxu0 %v890
      %v1025 = vpop.f32.mrb[0].mxu0
      %v1026 = vadd.f32 %v855, %v1025
      %v1027 = vpop.f32.mrb[0].mxu0
      %1028 = vmatprep.mubr.f32.mxu0 0.0
      %1029 = vmatmul.mubr.f32.gmra.mrb[0].mxu0 %v893
      %v1030 = vpop.f32.mrb[0].mxu0
      %v1031 = vadd.f32 %v855, %v1030
      %v1032 = vpop.f32.mrb[0].mxu0
      %1033 = vmatprep.mubr.f32.mxu0 0.0
      %1034 = vmatmul.mubr.f32.gmra.mrb[0].mxu0 %v896
      %v1035 = vpop.f32.mrb[0].mxu0
      %v1036 = vadd.f32 %v855, %v1035
      %v1037 = vpop.f32.mrb[0].mxu0
      %1038 = vmatprep.mubr.f32.mxu0 0.0
      %1039 = vmatmul.mubr.f32.gmra.mrb[0].mxu0 %v899
      %v1040 = vpop.f32.mrb[0].mxu0
      %v1041 = vadd.f32 %v855, %v1040
      %v1042 = vpop.f32.mrb[0].mxu0
      %1043 = vmatprep.mubr.f32.mxu0 0.0
      %1044 = vmatmul.mubr.f32.gmra.mrb[0].mxu0 %v902
      %v1045 = vpop.f32.mrb[0].mxu0
      %v1046 = vadd.f32 %v855, %v1045
      %v1047 = vpop.f32.mrb[0].mxu0
      %1048 = vdwg.mxu0
      %v1049 = vmax.f32 %v971, 0.0
      %v1050 = vmax.f32 %v976, 0.0
      %v1051 = vmax.f32 %v981, 0.0
      %v1052 = vmax.f32 %v986, 0.0
      %v1053 = vmax.f32 %v991, 0.0
      %v1054 = vmax.f32 %v996, 0.0
      %v1055 = vmax.f32 %v1001, 0.0
      %v1056 = vmax.f32 %v1006, 0.0
      %v1057 = vmax.f32 %v1011, 0.0
      %v1058 = vmax.f32 %v1016, 0.0
      %v1059 = vmax.f32 %v1021, 0.0
      %v1060 = vmax.f32 %v1026, 0.0
      %v1061 = vmax.f32 %v1031, 0.0
      %v1062 = vmax.f32 %v1036, 0.0
      %v1063 = vmax.f32 %v1041, 0.0
      %v1064 = vmax.f32 %v1046, 0.0
      %s1065 = scalar_lea.vmem %s1, 128
      %v1066 = vld [vmem:[%s1065] sm:$0xff]
      %v1067 = vld [vmem:[%s1065 + $0x8] sm:$0xff]
      %v1068 = vld [vmem:[%s1065 + $0x10] sm:$0xff]
      %v1069 = vld [vmem:[%s1065 + $0x18] sm:$0xff]
      %v1070 = vld [vmem:[%s2 + $0x4] sm:$0x1]
      %v1071 = vlaneseq
      %v1072 = vshrl.u32 %v1071, 7
      %v1073 = vsub.s32 0, %v1072
      %v1074 = vrot.slane %v1070, %v1073
      %v1076 = vsel %vm401, %v1049, 0
      %v1079 = vsel %vm401, %v1050, 0
      %v1082 = vsel %vm401, %v1051, 0
      %v1085 = vsel %vm401, %v1052, 0
      %v1088 = vsel %vm401, %v1053, 0
      %v1091 = vsel %vm401, %v1054, 0
      %v1094 = vsel %vm401, %v1055, 0
      %v1097 = vsel %vm401, %v1056, 0
      %v1100 = vsel %vm401, %v1057, 0
      %v1103 = vsel %vm401, %v1058, 0
      %v1106 = vsel %vm401, %v1059, 0
      %v1109 = vsel %vm401, %v1060, 0
      %v1112 = vsel %vm401, %v1061, 0
      %v1115 = vsel %vm401, %v1062, 0
      %v1118 = vsel %vm401, %v1063, 0
      %v1121 = vsel %vm401, %v1064, 0
      %1123 = vmatprep.subr.mxu0 0.0
      %1124 = vmatpush1.msra.mxu0 %v1066
      %1125 = vmatprep.subr.mxu0 0.0
      %1126 = vmatpush1.msra.mxu0 %v1067
      %1127 = vmatprep.subr.mxu0 0.0
      %1128 = vmatpush1.msra.mxu0 %v1068
      %1129 = vmatprep.subr.mxu0 0.0
      %1130 = vmatpush1.msra.mxu0 %v1069
      %1131 = vmatprep.subr.mxu0 0.0
      %1132 = vmatpush1.msra.mxu0 0.0
      %1133 = vmatprep.subr.mxu0 0.0
      %1134 = vmatpush1.msra.mxu0 0.0
      %1135 = vmatprep.subr.mxu0 0.0
      %1136 = vmatpush1.msra.mxu0 0.0
      %1137 = vmatprep.subr.mxu0 0.0
      %1138 = vmatpush1.msra.mxu0 0.0
      %1139 = vmatprep.subr.mxu0 0.0
      %1140 = vmatpush1.msra.mxu0 0.0
      %1141 = vmatprep.subr.mxu0 0.0
      %1142 = vmatpush1.msra.mxu0 0.0
      %1143 = vmatprep.subr.mxu0 0.0
      %1144 = vmatpush1.msra.mxu0 0.0
      %1145 = vmatprep.subr.mxu0 0.0
      %1146 = vmatpush1.msra.mxu0 0.0
      %1147 = vmatprep.subr.mxu0 0.0
      %1148 = vmatpush1.msra.mxu0 0.0
      %1149 = vmatprep.subr.mxu0 0.0
      %1150 = vmatpush1.msra.mxu0 0.0
      %1151 = vmatprep.subr.mxu0 0.0
      %1152 = vmatpush1.msra.mxu0 0.0
      %1153 = vmatprep.subr.mxu0 0.0
      %1154 = vmatpush1.msra.mxu0 0.0
      %1155 = vmatprep.subr.mxu0 0.0
      %1156 = vmatpush1.msra.mxu0 0.0
      %1157 = vmatprep.subr.mxu0 0.0
      %1158 = vmatpush1.msra.mxu0 0.0
      %1159 = vmatprep.subr.mxu0 0.0
      %1160 = vmatpush1.msra.mxu0 0.0
      %1161 = vmatprep.subr.mxu0 0.0
      %1162 = vmatpush1.msra.mxu0 0.0
      %1163 = vmatprep.subr.mxu0 0.0
      %1164 = vmatpush1.msra.mxu0 0.0
      %1165 = vmatprep.subr.mxu0 0.0
      %1166 = vmatpush1.msra.mxu0 0.0
      %1167 = vmatprep.subr.mxu0 0.0
      %1168 = vmatpush1.msra.mxu0 0.0
      %1169 = vmatprep.subr.mxu0 0.0
      %1170 = vmatpush1.msra.mxu0 0.0
      %1171 = vmatprep.subr.mxu0 0.0
      %1172 = vmatpush1.msra.mxu0 0.0
      %1173 = vmatprep.subr.mxu0 0.0
      %1174 = vmatpush1.msra.mxu0 0.0
      %1175 = vmatprep.subr.mxu0 0.0
      %1176 = vmatpush1.msra.mxu0 0.0
      %1177 = vmatprep.subr.mxu0 0.0
      %1178 = vmatpush1.msra.mxu0 0.0
      %1179 = vmatprep.subr.mxu0 0.0
      %1180 = vmatpush1.msra.mxu0 0.0
      %1181 = vmatprep.subr.mxu0 0.0
      %1182 = vmatpush1.msra.mxu0 0.0
      %1183 = vmatprep.subr.mxu0 0.0
      %1184 = vmatpush1.msra.mxu0 0.0
      %1185 = vmatprep.subr.mxu0 0.0
      %1186 = vmatpush1.msra.mxu0 0.0
      %1187 = vmatprep.mubr.f32.mxu0 0.0
      %1188 = vmatmul.mubr.f32.gmra.mrb[0].mxu0 %v1076
      %v1189 = vpop.f32.mrb[0].mxu0
      %v1190 = vadd.f32 %v1074, %v1189
      %v1191 = vpop.f32.mrb[0].mxu0
      %1192 = vmatprep.mubr.f32.mxu0 0.0
      %1193 = vmatmul.mubr.f32.gmra.mrb[0].mxu0 %v1079
      %v1194 = vpop.f32.mrb[0].mxu0
      %v1195 = vadd.f32 %v1074, %v1194
      %v1196 = vpop.f32.mrb[0].mxu0
      %1197 = vmatprep.mubr.f32.mxu0 0.0
      %1198 = vmatmul.mubr.f32.gmra.mrb[0].mxu0 %v1082
      %v1199 = vpop.f32.mrb[0].mxu0
      %v1200 = vadd.f32 %v1074, %v1199
      %v1201 = vpop.f32.mrb[0].mxu0
      %1202 = vmatprep.mubr.f32.mxu0 0.0
      %1203 = vmatmul.mubr.f32.gmra.mrb[0].mxu0 %v1085
      %v1204 = vpop.f32.mrb[0].mxu0
      %v1205 = vadd.f32 %v1074, %v1204
      %v1206 = vpop.f32.mrb[0].mxu0
      %1207 = vmatprep.mubr.f32.mxu0 0.0
      %1208 = vmatmul.mubr.f32.gmra.mrb[0].mxu0 %v1088
      %v1209 = vpop.f32.mrb[0].mxu0
      %v1210 = vadd.f32 %v1074, %v1209
      %v1211 = vpop.f32.mrb[0].mxu0
      %1212 = vmatprep.mubr.f32.mxu0 0.0
      %1213 = vmatmul.mubr.f32.gmra.mrb[0].mxu0 %v1091
      %v1214 = vpop.f32.mrb[0].mxu0
      %v1215 = vadd.f32 %v1074, %v1214
      %v1216 = vpop.f32.mrb[0].mxu0
      %1217 = vmatprep.mubr.f32.mxu0 0.0
      %1218 = vmatmul.mubr.f32.gmra.mrb[0].mxu0 %v1094
      %v1219 = vpop.f32.mrb[0].mxu0
      %v1220 = vadd.f32 %v1074, %v1219
      %v1221 = vpop.f32.mrb[0].mxu0
      %1222 = vmatprep.mubr.f32.mxu0 0.0
      %1223 = vmatmul.mubr.f32.gmra.mrb[0].mxu0 %v1097
      %v1224 = vpop.f32.mrb[0].mxu0
      %v1225 = vadd.f32 %v1074, %v1224
      %v1226 = vpop.f32.mrb[0].mxu0
      %1227 = vmatprep.mubr.f32.mxu0 0.0
      %1228 = vmatmul.mubr.f32.gmra.mrb[0].mxu0 %v1100
      %v1229 = vpop.f32.mrb[0].mxu0
      %v1230 = vadd.f32 %v1074, %v1229
      %v1231 = vpop.f32.mrb[0].mxu0
      %1232 = vmatprep.mubr.f32.mxu0 0.0
      %1233 = vmatmul.mubr.f32.gmra.mrb[0].mxu0 %v1103
      %v1234 = vpop.f32.mrb[0].mxu0
      %v1235 = vadd.f32 %v1074, %v1234
      %v1236 = vpop.f32.mrb[0].mxu0
      %1237 = vmatprep.mubr.f32.mxu0 0.0
      %1238 = vmatmul.mubr.f32.gmra.mrb[0].mxu0 %v1106
      %v1239 = vpop.f32.mrb[0].mxu0
      %v1240 = vadd.f32 %v1074, %v1239
      %v1241 = vpop.f32.mrb[0].mxu0
      %1242 = vmatprep.mubr.f32.mxu0 0.0
      %1243 = vmatmul.mubr.f32.gmra.mrb[0].mxu0 %v1109
      %v1244 = vpop.f32.mrb[0].mxu0
      %v1245 = vadd.f32 %v1074, %v1244
      %v1246 = vpop.f32.mrb[0].mxu0
      %1247 = vmatprep.mubr.f32.mxu0 0.0
      %1248 = vmatmul.mubr.f32.gmra.mrb[0].mxu0 %v1112
      %v1249 = vpop.f32.mrb[0].mxu0
      %v1250 = vadd.f32 %v1074, %v1249
      %v1251 = vpop.f32.mrb[0].mxu0
      %1252 = vmatprep.mubr.f32.mxu0 0.0
      %1253 = vmatmul.mubr.f32.gmra.mrb[0].mxu0 %v1115
      %v1254 = vpop.f32.mrb[0].mxu0
      %v1255 = vadd.f32 %v1074, %v1254
      %v1256 = vpop.f32.mrb[0].mxu0
      %1257 = vmatprep.mubr.f32.mxu0 0.0
      %1258 = vmatmul.mubr.f32.gmra.mrb[0].mxu0 %v1118
      %v1259 = vpop.f32.mrb[0].mxu0
      %v1260 = vadd.f32 %v1074, %v1259
      %v1261 = vpop.f32.mrb[0].mxu0
      %1262 = vmatprep.mubr.f32.mxu0 0.0
      %1263 = vmatmul.mubr.f32.gmra.mrb[0].mxu0 %v1121
      %v1264 = vpop.f32.mrb[0].mxu0
      %v1265 = vadd.f32 %v1074, %v1264
      %v1266 = vpop.f32.mrb[0].mxu0
      %1267 = vdwg.mxu0
      %v1268 = vmax.f32 %v1190, 0.0
      %v1269 = vmax.f32 %v1195, 0.0
      %v1270 = vmax.f32 %v1200, 0.0
      %v1271 = vmax.f32 %v1205, 0.0
      %v1272 = vmax.f32 %v1210, 0.0
      %v1273 = vmax.f32 %v1215, 0.0
      %v1274 = vmax.f32 %v1220, 0.0
      %v1275 = vmax.f32 %v1225, 0.0
      %v1276 = vmax.f32 %v1230, 0.0
      %v1277 = vmax.f32 %v1235, 0.0
      %v1278 = vmax.f32 %v1240, 0.0
      %v1279 = vmax.f32 %v1245, 0.0
      %v1280 = vmax.f32 %v1250, 0.0
      %v1281 = vmax.f32 %v1255, 0.0
      %v1282 = vmax.f32 %v1260, 0.0
      %v1283 = vmax.f32 %v1265, 0.0
      %v1284 = vadd.f32 %v830, %v1268
      %v1285 = vadd.f32 %v831, %v1269
      %v1286 = vadd.f32 %v832, %v1270
      %v1287 = vadd.f32 %v833, %v1271
      %v1288 = vadd.f32 %v834, %v1272
      %v1289 = vadd.f32 %v835, %v1273
      %v1290 = vadd.f32 %v836, %v1274
      %v1291 = vadd.f32 %v837, %v1275
      %v1292 = vadd.f32 %v838, %v1276
      %v1293 = vadd.f32 %v839, %v1277
      %v1294 = vadd.f32 %v840, %v1278
      %v1295 = vadd.f32 %v841, %v1279
      %v1296 = vadd.f32 %v842, %v1280
      %v1297 = vadd.f32 %v843, %v1281
      %v1298 = vadd.f32 %v844, %v1282
      %v1299 = vadd.f32 %v845, %v1283
      %s1300 = scalar_lea.vmem %s1, 160
      %v1301 = vld [vmem:[%s1300] sm:$0xff]
      %v1302 = vld [vmem:[%s1300 + $0x8] sm:$0xff]
      %v1303 = vld [vmem:[%s1300 + $0x10] sm:$0xff]
      %v1304 = vld [vmem:[%s1300 + $0x18] sm:$0xff]
      %v1305 = vld [vmem:[%s2 + $0x5] sm:$0x1]
      %v1306 = vlaneseq
      %v1307 = vshrl.u32 %v1306, 7
      %v1308 = vsub.s32 0, %v1307
      %v1309 = vrot.slane %v1305, %v1308
      %v1311 = vsel %vm401, %v1284, 0
      %v1314 = vsel %vm401, %v1285, 0
      %v1317 = vsel %vm401, %v1286, 0
      %v1320 = vsel %vm401, %v1287, 0
      %v1323 = vsel %vm401, %v1288, 0
      %v1326 = vsel %vm401, %v1289, 0
      %v1329 = vsel %vm401, %v1290, 0
      %v1332 = vsel %vm401, %v1291, 0
      %v1335 = vsel %vm401, %v1292, 0
      %v1338 = vsel %vm401, %v1293, 0
      %v1341 = vsel %vm401, %v1294, 0
      %v1344 = vsel %vm401, %v1295, 0
      %v1347 = vsel %vm401, %v1296, 0
      %v1350 = vsel %vm401, %v1297, 0
      %v1353 = vsel %vm401, %v1298, 0
      %v1356 = vsel %vm401, %v1299, 0
      %1358 = vmatprep.subr.mxu0 0.0
      %1359 = vmatpush1.msra.mxu0 %v1301
      %1360 = vmatprep.subr.mxu0 0.0
      %1361 = vmatpush1.msra.mxu0 %v1302
      %1362 = vmatprep.subr.mxu0 0.0
      %1363 = vmatpush1.msra.mxu0 %v1303
      %1364 = vmatprep.subr.mxu0 0.0
      %1365 = vmatpush1.msra.mxu0 %v1304
      %1366 = vmatprep.subr.mxu0 0.0
      %1367 = vmatpush1.msra.mxu0 0.0
      %1368 = vmatprep.subr.mxu0 0.0
      %1369 = vmatpush1.msra.mxu0 0.0
      %1370 = vmatprep.subr.mxu0 0.0
      %1371 = vmatpush1.msra.mxu0 0.0
      %1372 = vmatprep.subr.mxu0 0.0
      %1373 = vmatpush1.msra.mxu0 0.0
      %1374 = vmatprep.subr.mxu0 0.0
      %1375 = vmatpush1.msra.mxu0 0.0
      %1376 = vmatprep.subr.mxu0 0.0
      %1377 = vmatpush1.msra.mxu0 0.0
      %1378 = vmatprep.subr.mxu0 0.0
      %1379 = vmatpush1.msra.mxu0 0.0
      %1380 = vmatprep.subr.mxu0 0.0
      %1381 = vmatpush1.msra.mxu0 0.0
      %1382 = vmatprep.subr.mxu0 0.0
      %1383 = vmatpush1.msra.mxu0 0.0
      %1384 = vmatprep.subr.mxu0 0.0
      %1385 = vmatpush1.msra.mxu0 0.0
      %1386 = vmatprep.subr.mxu0 0.0
      %1387 = vmatpush1.msra.mxu0 0.0
      %1388 = vmatprep.subr.mxu0 0.0
      %1389 = vmatpush1.msra.mxu0 0.0
      %1390 = vmatprep.subr.mxu0 0.0
      %1391 = vmatpush1.msra.mxu0 0.0
      %1392 = vmatprep.subr.mxu0 0.0
      %1393 = vmatpush1.msra.mxu0 0.0
      %1394 = vmatprep.subr.mxu0 0.0
      %1395 = vmatpush1.msra.mxu0 0.0
      %1396 = vmatprep.subr.mxu0 0.0
      %1397 = vmatpush1.msra.mxu0 0.0
      %1398 = vmatprep.subr.mxu0 0.0
      %1399 = vmatpush1.msra.mxu0 0.0
      %1400 = vmatprep.subr.mxu0 0.0
      %1401 = vmatpush1.msra.mxu0 0.0
      %1402 = vmatprep.subr.mxu0 0.0
      %1403 = vmatpush1.msra.mxu0 0.0
      %1404 = vmatprep.subr.mxu0 0.0
      %1405 = vmatpush1.msra.mxu0 0.0
      %1406 = vmatprep.subr.mxu0 0.0
      %1407 = vmatpush1.msra.mxu0 0.0
      %1408 = vmatprep.subr.mxu0 0.0
      %1409 = vmatpush1.msra.mxu0 0.0
      %1410 = vmatprep.subr.mxu0 0.0
      %1411 = vmatpush1.msra.mxu0 0.0
      %1412 = vmatprep.subr.mxu0 0.0
      %1413 = vmatpush1.msra.mxu0 0.0
      %1414 = vmatprep.subr.mxu0 0.0
      %1415 = vmatpush1.msra.mxu0 0.0
      %1416 = vmatprep.subr.mxu0 0.0
      %1417 = vmatpush1.msra.mxu0 0.0
      %1418 = vmatprep.subr.mxu0 0.0
      %1419 = vmatpush1.msra.mxu0 0.0
      %1420 = vmatprep.subr.mxu0 0.0
      %1421 = vmatpush1.msra.mxu0 0.0
      %1422 = vmatprep.mubr.f32.mxu0 0.0
      %1423 = vmatmul.mubr.f32.gmra.mrb[0].mxu0 %v1311
      %v1424 = vpop.f32.mrb[0].mxu0
      %v1425 = vadd.f32 %v1309, %v1424
      %v1426 = vpop.f32.mrb[0].mxu0
      %1427 = vmatprep.mubr.f32.mxu0 0.0
      %1428 = vmatmul.mubr.f32.gmra.mrb[0].mxu0 %v1314
      %v1429 = vpop.f32.mrb[0].mxu0
      %v1430 = vadd.f32 %v1309, %v1429
      %v1431 = vpop.f32.mrb[0].mxu0
      %1432 = vmatprep.mubr.f32.mxu0 0.0
      %1433 = vmatmul.mubr.f32.gmra.mrb[0].mxu0 %v1317
      %v1434 = vpop.f32.mrb[0].mxu0
      %v1435 = vadd.f32 %v1309, %v1434
      %v1436 = vpop.f32.mrb[0].mxu0
      %1437 = vmatprep.mubr.f32.mxu0 0.0
      %1438 = vmatmul.mubr.f32.gmra.mrb[0].mxu0 %v1320
      %v1439 = vpop.f32.mrb[0].mxu0
      %v1440 = vadd.f32 %v1309, %v1439
      %v1441 = vpop.f32.mrb[0].mxu0
      %1442 = vmatprep.mubr.f32.mxu0 0.0
      %1443 = vmatmul.mubr.f32.gmra.mrb[0].mxu0 %v1323
      %v1444 = vpop.f32.mrb[0].mxu0
      %v1445 = vadd.f32 %v1309, %v1444
      %v1446 = vpop.f32.mrb[0].mxu0
      %1447 = vmatprep.mubr.f32.mxu0 0.0
      %1448 = vmatmul.mubr.f32.gmra.mrb[0].mxu0 %v1326
      %v1449 = vpop.f32.mrb[0].mxu0
      %v1450 = vadd.f32 %v1309, %v1449
      %v1451 = vpop.f32.mrb[0].mxu0
      %1452 = vmatprep.mubr.f32.mxu0 0.0
      %1453 = vmatmul.mubr.f32.gmra.mrb[0].mxu0 %v1329
      %v1454 = vpop.f32.mrb[0].mxu0
      %v1455 = vadd.f32 %v1309, %v1454
      %v1456 = vpop.f32.mrb[0].mxu0
      %1457 = vmatprep.mubr.f32.mxu0 0.0
      %1458 = vmatmul.mubr.f32.gmra.mrb[0].mxu0 %v1332
      %v1459 = vpop.f32.mrb[0].mxu0
      %v1460 = vadd.f32 %v1309, %v1459
      %v1461 = vpop.f32.mrb[0].mxu0
      %1462 = vmatprep.mubr.f32.mxu0 0.0
      %1463 = vmatmul.mubr.f32.gmra.mrb[0].mxu0 %v1335
      %v1464 = vpop.f32.mrb[0].mxu0
      %v1465 = vadd.f32 %v1309, %v1464
      %v1466 = vpop.f32.mrb[0].mxu0
      %1467 = vmatprep.mubr.f32.mxu0 0.0
      %1468 = vmatmul.mubr.f32.gmra.mrb[0].mxu0 %v1338
      %v1469 = vpop.f32.mrb[0].mxu0
      %v1470 = vadd.f32 %v1309, %v1469
      %v1471 = vpop.f32.mrb[0].mxu0
      %1472 = vmatprep.mubr.f32.mxu0 0.0
      %1473 = vmatmul.mubr.f32.gmra.mrb[0].mxu0 %v1341
      %v1474 = vpop.f32.mrb[0].mxu0
      %v1475 = vadd.f32 %v1309, %v1474
      %v1476 = vpop.f32.mrb[0].mxu0
      %1477 = vmatprep.mubr.f32.mxu0 0.0
      %1478 = vmatmul.mubr.f32.gmra.mrb[0].mxu0 %v1344
      %v1479 = vpop.f32.mrb[0].mxu0
      %v1480 = vadd.f32 %v1309, %v1479
      %v1481 = vpop.f32.mrb[0].mxu0
      %1482 = vmatprep.mubr.f32.mxu0 0.0
      %1483 = vmatmul.mubr.f32.gmra.mrb[0].mxu0 %v1347
      %v1484 = vpop.f32.mrb[0].mxu0
      %v1485 = vadd.f32 %v1309, %v1484
      %v1486 = vpop.f32.mrb[0].mxu0
      %1487 = vmatprep.mubr.f32.mxu0 0.0
      %1488 = vmatmul.mubr.f32.gmra.mrb[0].mxu0 %v1350
      %v1489 = vpop.f32.mrb[0].mxu0
      %v1490 = vadd.f32 %v1309, %v1489
      %v1491 = vpop.f32.mrb[0].mxu0
      %1492 = vmatprep.mubr.f32.mxu0 0.0
      %1493 = vmatmul.mubr.f32.gmra.mrb[0].mxu0 %v1353
      %v1494 = vpop.f32.mrb[0].mxu0
      %v1495 = vadd.f32 %v1309, %v1494
      %v1496 = vpop.f32.mrb[0].mxu0
      %1497 = vmatprep.mubr.f32.mxu0 0.0
      %1498 = vmatmul.mubr.f32.gmra.mrb[0].mxu0 %v1356
      %v1499 = vpop.f32.mrb[0].mxu0
      %v1500 = vadd.f32 %v1309, %v1499
      %v1501 = vpop.f32.mrb[0].mxu0
      %1502 = vdwg.mxu0
      %vm1503 = vcmask 64512
      %1504 = vst.msk [vmem:[%s172] sm:$0xff] %vm1503, %v1425
      %1505 = vst.msk [vmem:[%s172 + $0x8] sm:$0xff] %vm1503, %v1430
      %1506 = vst.msk [vmem:[%s172 + $0x10] sm:$0xff] %vm1503, %v1435
      %1507 = vst.msk [vmem:[%s172 + $0x18] sm:$0xff] %vm1503, %v1440
      %1508 = vst.msk [vmem:[%s172 + $0x20] sm:$0xff] %vm1503, %v1445
      %1509 = vst.msk [vmem:[%s172 + $0x28] sm:$0xff] %vm1503, %v1450
      %1510 = vst.msk [vmem:[%s172 + $0x30] sm:$0xff] %vm1503, %v1455
      %1511 = vst.msk [vmem:[%s172 + $0x38] sm:$0xff] %vm1503, %v1460
      %1512 = vst.msk [vmem:[%s172 + $0x40] sm:$0xff] %vm1503, %v1465
      %1513 = vst.msk [vmem:[%s172 + $0x48] sm:$0xff] %vm1503, %v1470
      %1514 = vst.msk [vmem:[%s172 + $0x50] sm:$0xff] %vm1503, %v1475
      %1515 = vst.msk [vmem:[%s172 + $0x58] sm:$0xff] %vm1503, %v1480
      %1516 = vst.msk [vmem:[%s172 + $0x60] sm:$0xff] %vm1503, %v1485
      %1517 = vst.msk [vmem:[%s172 + $0x68] sm:$0xff] %vm1503, %v1490
      %1518 = vst.msk [vmem:[%s172 + $0x70] sm:$0xff] %vm1503, %v1495
      %1519 = vst.msk [vmem:[%s172 + $0x78] sm:$0xff] %vm1503, %v1500
      %s1520 = smul.u32 16, %s14
      %p1521 = scmp.lt.s32.totalorder %s1520, 63
      %s1522 = scalar_select %p1521, %s1520, 63
      %s1523 = smul.addr %s1522, 8
      %s1524 = scalar_lea.vmem %s3, %s1523
      // Predicated region
      $region33: #{feedforward_pallas.1} parent=31 // pred_check
        %p1525 = pneg %p100
      $region34: #{feedforward_pallas.1} parent=31 // pred_check_branch
        %1527 = sbr.rel (%p1525) target = $region36
      $region35: #{feedforward_pallas.1} parent=31 // pred_region
        %s1528 = smul.u32 16, %s14
      $region36: #{feedforward_pallas.1} parent=31 // pred_fallthru
        _
    $region32: #{feedforward_pallas.1} parent=5 // pred_fallthru
      _
    %p1529 = scmp.le.s32.totalorder 2, %s9
    // Predicated region
    $region37: #{feedforward_pallas.1} parent=5 // pred_check
      %p1530 = pneg %p1529
    $region38: #{feedforward_pallas.1} parent=5 // pred_check_branch
      %1532 = sbr.rel (%p1530) target = $region40
    $region39: #{feedforward_pallas.1} parent=5 // pred_region
      %s1533 = ssub.s32 %s9, 2
      // Predicated region
      $region41: #{feedforward_pallas.1} parent=39 // pred_check
        %p1534 = pneg %p106
      $region42: #{feedforward_pallas.1} parent=39 // pred_check_branch
        %1536 = sbr.rel (%p1534) target = $region44
      $region43: #{feedforward_pallas.1} parent=39 // pred_region
        %s1537 = smul.u32 16, %s15
        %p1538 = scmp.lt.s32.totalorder %s1537, 63
        %s1539 = scalar_select %p1538, %s1537, 63
        %s1540 = smul.addr %s1539, 8
        %s1541 = scalar_lea.vmem %s3, %s1540
      $region44: #{feedforward_pallas.1} parent=39 // pred_fallthru
        _
    $region40: #{feedforward_pallas.1} parent=5 // pred_fallthru
      _
  $region6: #{feedforward_pallas.1} parent=0 // loop_footer
    %s13 = sadd.s32 1, %s9
  $region7: #{feedforward_pallas.1} parent=0 // loop_footer_branch
    %8 = sbr.rel target = $region3
  $region8: #{feedforward_pallas.1} parent=0 // loop_exit
    _

</llo_original>
